<compile_context>
chip_gen: v7x
topology: tpu7x:2x2x1
jax: 0.10.0
libtpu: 0.0.40
codegen_flags: <defaults>
</compile_context>

<pallas_src>
import functools

import jax
import jax.numpy as jnp
from jax.experimental import pallas as pl
from jax.experimental.pallas import tpu as pltpu

NEG_INF = -1e30


def _gat_fused_kernel(x_ref, adj_ref, eh_ref, rm_ref, sm_ref,
                      w1_ref, wd1_ref, ws1_ref, b1_ref, bm1_ref, mm1_ref,
                      w2_ref, wd2_ref, ws2_ref, b2_ref, bm2_ref, mm2_ref,
                      o_ref, *, heads, negative_slope):
    n = x_ref.shape[0]
    e_h = eh_ref[...]        # (heads, n*heads) 0/1: e_h[h, j*heads+h'] = (h == h')
    r_m = rm_ref[...]        # (n, n*heads)     0/1: r_m[j, j'*heads+h] = (j == j')
    s_m = sm_ref[...]        # (n*heads, heads) 0/1: s_m[j*heads+h', h] = (h' == h)

    # Additive attention mask, built ONCE and shared by both layers (#4).
    # mask_wide[i, j*heads + h] = 0 if edge j->i else NEG_INF.
    adj_f = (adj_ref[...] != 0).astype(jnp.float32)          # compare only, no unpack
    adj_wide = jnp.dot(adj_f, r_m, preferred_element_type=jnp.float32)
    mask_wide = jnp.where(adj_wide > 0.5, jnp.float32(0.0), jnp.float32(NEG_INF))

    def gat_layer(x_b, w_ref, wd_ref, ws_ref, b_ref, bm_ref, mm_ref, apply_relu):
        hc = w_ref.shape[1]                                   # heads * C
        # Projections: features + folded attention logits, all on the MXU (#1).
        hfeat = jnp.dot(x_b, w_ref[...].astype(jnp.bfloat16),
                        preferred_element_type=jnp.float32)   # (n, heads*C) f32
        a_dst = jnp.dot(x_b, wd_ref[...].astype(jnp.bfloat16),
                        preferred_element_type=jnp.float32)   # (n, heads) f32
        a_src = jnp.dot(x_b, ws_ref[...].astype(jnp.bfloat16),
                        preferred_element_type=jnp.float32)   # (n, heads) f32

        # Lane-dense logits (#3): e[i, j*heads + h] = lrelu(a_dst[i,h] + a_src[j,h]).
        dst_wide = jnp.dot(a_dst, e_h, preferred_element_type=jnp.float32)
        src_bcast = jnp.dot(a_src, e_h, preferred_element_type=jnp.float32)
        # src_row[0, j*heads+h] = a_src[j, h]  (replaces 8 tiny transposes, #2).
        src_row = jnp.sum(r_m * src_bcast, axis=0, keepdims=True)
        e = dst_wide + src_row
        e = jnp.where(e > 0, e, negative_slope * e)
        e = e + mask_wide

        # Per-head softmax over incoming edges; reductions/broadcasts via 0/1 matmuls.
        m = jnp.max(e, axis=-1, keepdims=True)                # row max (valid entries)
        p = jnp.exp(e - m)                                    # non-edges -> exactly 0
        den = jnp.dot(p, s_m, preferred_element_type=jnp.float32)     # (n, heads)
        alpha = p * jnp.dot(pl.reciprocal(den, approx=True), e_h,
                            preferred_element_type=jnp.float32)       # (n, n*heads)

        # Batched aggregation (#5): one matmul against block-diagonal features.
        hfeat_b = hfeat.astype(jnp.bfloat16)                  # cast once per layer (#11)
        hrep = jnp.broadcast_to(hfeat_b[:, None, :], (n, heads, hc))
        hrep = hrep.reshape(n * heads, hc)                    # leading-dim reshape (cheap)
        hbd = hrep * bm_ref[...]                              # zero off-head blocks
        agg = jnp.dot(alpha.astype(jnp.bfloat16), hbd,
                      preferred_element_type=jnp.float32)     # (n, heads*C)
        # Head-mean + bias as one tiny f32 matmul (concat=False).
        out = jnp.dot(agg, mm_ref[...], preferred_element_type=jnp.float32) + b_ref[...]
        return jnp.maximum(out, 0.0) if apply_relu else out

    x1 = gat_layer(x_ref[...].astype(jnp.bfloat16),
                   w1_ref, wd1_ref, ws1_ref, b1_ref, bm1_ref, mm1_ref, True)
    out = gat_layer(x1.astype(jnp.bfloat16),
                    w2_ref, wd2_ref, ws2_ref, b2_ref, bm2_ref, mm2_ref, False)
    # TODO(synk): pad/pack the (N, out_feats<128) output to a lane-dense slab for
    # large N (review #12); negligible at N=16.
    o_ref[...] = out.astype(o_ref.dtype)


def _structural_constants(n, heads, c1, c2):
    """Compile-time 0/1 matrices for the lane-dense layout (col index = j*heads + h)."""
    wide = n * heads
    col = jnp.arange(wide)
    e_h = (col[None, :] % heads == jnp.arange(heads)[:, None]).astype(jnp.float32)
    r_m = (col[None, :] // heads == jnp.arange(n)[:, None]).astype(jnp.float32)
    s_m = jnp.transpose(e_h)                                   # (wide, heads)

    def block_mask(c):                                         # (wide, heads*c) bf16 0/1
        row = jnp.arange(wide)[:, None]
        cc = jnp.arange(heads * c)[None, :]
        return ((row % heads) == (cc // c)).astype(jnp.bfloat16)

    def mean_mat(c):                                           # (heads*c, c) f32, 1/heads
        r = jnp.arange(heads * c)[:, None]
        cc = jnp.arange(c)[None, :]
        return ((r % c) == cc).astype(jnp.float32) * (1.0 / heads)

    return e_h, r_m, s_m, block_mask(c1), mean_mat(c1), block_mask(c2), mean_mat(c2)


def gat_fused(x, adj, kin, *, heads, out_feats, negative_slope=0.2):
    """Both GATConv layers (concat=False) in one pallas_call; graph fully VMEM-resident."""
    n = x.shape[0]
    kernel = functools.partial(_gat_fused_kernel, heads=heads,
                               negative_slope=negative_slope)
    vmem = pl.BlockSpec(memory_space=pltpu.MemorySpace.VMEM)   # whole array in VMEM
    return pl.pallas_call(
        kernel,
        out_shape=jax.ShapeDtypeStruct((n, out_feats), jnp.float32),
        in_specs=[vmem] * (2 + len(kin)),
        out_specs=vmem,
        # Explicit scoped-VMEM budget (#7): far above the ~1 MiB this toy graph
        # needs, and <= physical VMEM on v5e/v6e (128 MiB) and v7x (64 MiB).
        compiler_params=pltpu.CompilerParams(vmem_limit_bytes=32 * 1024 * 1024),
    )(x, adj, *kin)


def _glorot(key, shape, fan_in, fan_out):
    limit = (6.0 / (fan_in + fan_out)) ** 0.5
    return jax.random.uniform(key, shape, jnp.float32, -limit, limit)


def init_gat_params(key, in_feats, h_feats, out_feats, heads=8):
    ks = jax.random.split(key, 6)
    # Projection weights are stored pre-concatenated over heads:
    #   w[:, h*C:(h+1)*C] is head h's (F_in, C) matrix (one lane-dense matmul).
    return dict(
        w1=_glorot(ks[0], (in_feats, heads * h_feats), in_feats, heads * h_feats),
        as1=_glorot(ks[1], (heads, 1, h_feats), h_feats, h_feats),
        ad1=_glorot(ks[2], (heads, 1, h_feats), h_feats, h_feats),
        b1=jnp.zeros((1, h_feats), jnp.float32),
        w2=_glorot(ks[3], (h_feats, heads * out_feats), h_feats, heads * out_feats),
        as2=_glorot(ks[4], (heads, 1, out_feats), out_feats, out_feats),
        ad2=_glorot(ks[5], (heads, 1, out_feats), out_feats, out_feats),
        b2=jnp.zeros((1, out_feats), jnp.float32),
    )


@functools.partial(jax.jit, static_argnames=("num_nodes", "heads"))
def gat_forward(params, x, edge_index, *, num_nodes, heads=8):
    n = num_nodes
    c1 = params["w1"].shape[-1] // heads
    c2 = params["w2"].shape[-1] // heads

    # Dense int8 adjacency adj[dst, src] = 1 plus self-loops (GATConv default
    # add_self_loops=True).  NOTE(review #10): for a static graph, the adjacency,
    # the folded attention weights and the structural constants below should be
    # built once and cached by the caller; the tiled large-N kernel should take
    # edge offsets via PrefetchScalarGridSpec instead of a dense O(N^2) matrix.
    src, dst = edge_index[0], edge_index[1]
    adj = jnp.zeros((n, n), jnp.int8).at[dst, src].set(1)
    idx = jnp.arange(n)
    adj = adj.at[idx, idx].set(1)

    # Fold attention vectors into (F_in, heads) projections (#1):
    #   <h_i, att_h> = x_i @ (W_h @ att_h), done once outside the kernel.
    def fold(w, att):
        f_in = w.shape[0]
        wr = w.reshape(f_in, heads, w.shape[1] // heads)
        return jnp.einsum("fhc,hc->fh", wr, att[:, 0, :])

    wd1, ws1 = fold(params["w1"], params["ad1"]), fold(params["w1"], params["as1"])
    wd2, ws2 = fold(params["w2"], params["ad2"]), fold(params["w2"], params["as2"])

    eh, rm, sm, bm1, mm1, bm2, mm2 = _structural_constants(n, heads, c1, c2)

    kin = (eh, rm, sm,
           params["w1"], wd1, ws1, params["b1"], bm1, mm1,
           params["w2"], wd2, ws2, params["b2"], bm2, mm2)
    # F.dropout(x, p=0.6, training=...) and the attention dropout are identity in eval.
    return gat_fused(x, adj, kin, heads=heads, out_feats=c2)


def gat_reference(params, x, edge_index, *, num_nodes, heads=8,
                  negative_slope=0.2):
    """Pure-JAX f32 reference with identical semantics (for sanity checking)."""
    src, dst = edge_index[0], edge_index[1]
    adj = jnp.zeros((num_nodes, num_nodes), jnp.float32)
    adj = adj.at[dst, src].set(1.0)
    idx = jnp.arange(num_nodes)
    adj = adj.at[idx, idx].set(1.0)
    edge = adj > 0

    def layer(x, w, a_s, a_d, b, relu):
        c = w.shape[-1] // heads
        hfeat = x @ w
        out = 0.0
        for h in range(heads):
            hh = hfeat[:, h * c:(h + 1) * c]
            asrc = jnp.sum(hh * a_s[h], -1, keepdims=True)
            adst = jnp.sum(hh * a_d[h], -1, keepdims=True)
            e = adst + asrc.T
            e = jnp.where(e > 0, e, negative_slope * e)
            e = jnp.where(edge, e, -jnp.inf)
            alpha = jax.nn.softmax(e, axis=-1)
            out = out + alpha @ hh
        out = out / heads + b
        return jnp.maximum(out, 0.0) if relu else out

    x1 = layer(x, params["w1"], params["as1"], params["ad1"], params["b1"], True)
    return layer(x1, params["w2"], params["as2"], params["ad2"], params["b2"], False)


if __name__ == "__main__":
    N = 16          # nodes
    IN_FEATS = 8
    H_FEATS = 32
    OUT_FEATS = 4
    HEADS = 8
    E = 48          # edges

    key = jax.random.PRNGKey(0)
    k_x, k_e, k_p = jax.random.split(key, 3)

    x = jax.random.normal(k_x, (N, IN_FEATS), jnp.float32)
    edge_index = jax.random.randint(k_e, (2, E), 0, N, jnp.int32)
    params = init_gat_params(k_p, IN_FEATS, H_FEATS, OUT_FEATS, HEADS)

    out = gat_forward(params, x, edge_index, num_nodes=N, heads=HEADS)
    out = jax.block_until_ready(out)
    assert out.shape == (N, OUT_FEATS) and out.dtype == jnp.float32

    ref = gat_reference(params, x, edge_index, num_nodes=N, heads=HEADS)
    max_err = float(jnp.max(jnp.abs(out - ref)))
    assert jnp.allclose(out, ref, atol=3e-2, rtol=3e-2), max_err  # bf16 MXU tolerance
    print("KERNEL_OK")
</pallas_src>

<mosaic_0001>
module attributes {stable_mosaic.version = 11 : i64} {
  func.func @_gat_fused_kernel(%arg0: memref<16x8xf32, #tpu.memory_space<vmem>>, %arg1: memref<16x16xi8, #tpu.memory_space<vmem>>, %arg2: memref<8x128xf32, #tpu.memory_space<vmem>>, %arg3: memref<16x128xf32, #tpu.memory_space<vmem>>, %arg4: memref<128x8xf32, #tpu.memory_space<vmem>>, %arg5: memref<8x256xf32, #tpu.memory_space<vmem>>, %arg6: memref<8x8xf32, #tpu.memory_space<vmem>>, %arg7: memref<8x8xf32, #tpu.memory_space<vmem>>, %arg8: memref<1x32xf32, #tpu.memory_space<vmem>>, %arg9: memref<128x256xbf16, #tpu.memory_space<vmem>>, %arg10: memref<256x32xf32, #tpu.memory_space<vmem>>, %arg11: memref<32x32xf32, #tpu.memory_space<vmem>>, %arg12: memref<32x8xf32, #tpu.memory_space<vmem>>, %arg13: memref<32x8xf32, #tpu.memory_space<vmem>>, %arg14: memref<1x4xf32, #tpu.memory_space<vmem>>, %arg15: memref<128x32xbf16, #tpu.memory_space<vmem>>, %arg16: memref<32x4xf32, #tpu.memory_space<vmem>>, %arg17: memref<16x4xf32, #tpu.memory_space<vmem>>) attributes {dimension_semantics = [], scalar_prefetch = 0 : i64, scratch_operands = 0 : i64, tpu.core_type = #tpu.core_type<tc>} {
    %c0 = arith.constant 0 : index
    %c0_0 = arith.constant 0 : index
    %0 = vector.load %arg2[%c0, %c0_0] : memref<8x128xf32, #tpu.memory_space<vmem>>, vector<8x128xf32>
    %c0_1 = arith.constant 0 : index
    %c0_2 = arith.constant 0 : index
    %1 = vector.load %arg3[%c0_1, %c0_2] : memref<16x128xf32, #tpu.memory_space<vmem>>, vector<16x128xf32>
    %c0_3 = arith.constant 0 : index
    %c0_4 = arith.constant 0 : index
    %2 = vector.load %arg4[%c0_3, %c0_4] : memref<128x8xf32, #tpu.memory_space<vmem>>, vector<128x8xf32>
    %c0_5 = arith.constant 0 : index
    %c0_6 = arith.constant 0 : index
    %3 = vector.load %arg1[%c0_5, %c0_6] : memref<16x16xi8, #tpu.memory_space<vmem>>, vector<16x16xi8>
    %c0_i8 = arith.constant 0 : i8
    %4 = vector.broadcast %c0_i8 : i8 to vector<16x16xi8>
    %5 = arith.cmpi ne, %3, %4 : vector<16x16xi8>
    %6 = arith.extui %5 : vector<16x16xi1> to vector<16x16xi32>
    %7 = arith.sitofp %6 : vector<16x16xi32> to vector<16x16xf32>
    %cst = arith.constant dense<0.000000e+00> : vector<16x128xf32>
    %8 = tpu.matmul %7, %1, %cst {dimension_numbers = #tpu.dot_dimension_numbers<[1], [0], [0], [1], [0, 0, 1, 1], [], []>} : vector<16x16xf32>, vector<16x128xf32>, vector<16x128xf32> -> vector<16x128xf32>
    %cst_7 = arith.constant 5.000000e-01 : f32
    %9 = vector.broadcast %cst_7 : f32 to vector<16x128xf32>
    %10 = arith.cmpf ogt, %8, %9 : vector<16x128xf32>
    %cst_8 = arith.constant 0.000000e+00 : f32
    %cst_9 = arith.constant -1.000000e+30 : f32
    %11 = vector.broadcast %cst_8 : f32 to vector<16x128xf32>
    %12 = vector.broadcast %cst_9 : f32 to vector<16x128xf32>
    %13 = arith.select %10, %11, %12 : vector<16x128xi1>, vector<16x128xf32>
    %c0_10 = arith.constant 0 : index
    %c0_11 = arith.constant 0 : index
    %14 = vector.load %arg0[%c0_10, %c0_11] : memref<16x8xf32, #tpu.memory_space<vmem>>, vector<16x8xf32>
    %15 = arith.truncf %14 : vector<16x8xf32> to vector<16x8xbf16>
    %c0_12 = arith.constant 0 : index
    %c0_13 = arith.constant 0 : index
    %16 = vector.load %arg5[%c0_12, %c0_13] : memref<8x256xf32, #tpu.memory_space<vmem>>, vector<8x256xf32>
    %17 = arith.truncf %16 : vector<8x256xf32> to vector<8x256xbf16>
    %cst_14 = arith.constant dense<0.000000e+00> : vector<16x256xf32>
    %18 = tpu.matmul %15, %17, %cst_14 {dimension_numbers = #tpu.dot_dimension_numbers<[1], [0], [0], [1], [0, 0, 1, 1], [], []>} : vector<16x8xbf16>, vector<8x256xbf16>, vector<16x256xf32> -> vector<16x256xf32>
    %c0_15 = arith.constant 0 : index
    %c0_16 = arith.constant 0 : index
    %19 = vector.load %arg6[%c0_15, %c0_16] : memref<8x8xf32, #tpu.memory_space<vmem>>, vector<8x8xf32>
    %20 = arith.truncf %19 : vector<8x8xf32> to vector<8x8xbf16>
    %cst_17 = arith.constant dense<0.000000e+00> : vector<16x8xf32>
    %21 = tpu.matmul %15, %20, %cst_17 {dimension_numbers = #tpu.dot_dimension_numbers<[1], [0], [0], [1], [0, 0, 1, 1], [], []>} : vector<16x8xbf16>, vector<8x8xbf16>, vector<16x8xf32> -> vector<16x8xf32>
    %c0_18 = arith.constant 0 : index
    %c0_19 = arith.constant 0 : index
    %22 = vector.load %arg7[%c0_18, %c0_19] : memref<8x8xf32, #tpu.memory_space<vmem>>, vector<8x8xf32>
    %23 = arith.truncf %22 : vector<8x8xf32> to vector<8x8xbf16>
    %cst_20 = arith.constant dense<0.000000e+00> : vector<16x8xf32>
    %24 = tpu.matmul %15, %23, %cst_20 {dimension_numbers = #tpu.dot_dimension_numbers<[1], [0], [0], [1], [0, 0, 1, 1], [], []>} : vector<16x8xbf16>, vector<8x8xbf16>, vector<16x8xf32> -> vector<16x8xf32>
    %cst_21 = arith.constant dense<0.000000e+00> : vector<16x128xf32>
    %25 = tpu.matmul %21, %0, %cst_21 {dimension_numbers = #tpu.dot_dimension_numbers<[1], [0], [0], [1], [0, 0, 1, 1], [], []>} : vector<16x8xf32>, vector<8x128xf32>, vector<16x128xf32> -> vector<16x128xf32>
    %cst_22 = arith.constant dense<0.000000e+00> : vector<16x128xf32>
    %26 = tpu.matmul %24, %0, %cst_22 {dimension_numbers = #tpu.dot_dimension_numbers<[1], [0], [0], [1], [0, 0, 1, 1], [], []>} : vector<16x8xf32>, vector<8x128xf32>, vector<16x128xf32> -> vector<16x128xf32>
    %27 = arith.mulf %1, %26 : vector<16x128xf32>
    %cst_23 = arith.constant dense<0.000000e+00> : vector<128xf32>
    %28 = vector.multi_reduction <add>, %27, %cst_23 [0] : vector<16x128xf32> to vector<128xf32>
    %29 = vector.shape_cast %28 : vector<128xf32> to vector<1x128xf32>
    %30 = vector.broadcast %29 : vector<1x128xf32> to vector<16x128xf32>
    %31 = arith.addf %25, %30 : vector<16x128xf32>
    %cst_24 = arith.constant 0.000000e+00 : f32
    %32 = vector.broadcast %cst_24 : f32 to vector<16x128xf32>
    %33 = arith.cmpf ogt, %31, %32 : vector<16x128xf32>
    %cst_25 = arith.constant 2.000000e-01 : f32
    %34 = vector.broadcast %cst_25 : f32 to vector<16x128xf32>
    %35 = arith.mulf %34, %31 : vector<16x128xf32>
    %36 = arith.select %33, %31, %35 : vector<16x128xi1>, vector<16x128xf32>
    %37 = arith.addf %36, %13 : vector<16x128xf32>
    %cst_26 = arith.constant dense<0xFF800000> : vector<16xf32>
    %38 = vector.multi_reduction <maximumf>, %37, %cst_26 [1] : vector<16x128xf32> to vector<16xf32>
    %39 = vector.shape_cast %38 : vector<16xf32> to vector<16x1xf32>
    %40 = vector.broadcast %39 : vector<16x1xf32> to vector<16x128xf32>
    %41 = arith.subf %37, %40 : vector<16x128xf32>
    %42 = math.exp %41 : vector<16x128xf32>
    %cst_27 = arith.constant dense<0.000000e+00> : vector<16x8xf32>
    %43 = tpu.matmul %42, %2, %cst_27 {dimension_numbers = #tpu.dot_dimension_numbers<[1], [0], [0], [1], [0, 0, 1, 1], [], []>} : vector<16x128xf32>, vector<128x8xf32>, vector<16x8xf32> -> vector<16x8xf32>
    %44 = tpu.reciprocal %43 {approx = true} : vector<16x8xf32> -> vector<16x8xf32>
    %cst_28 = arith.constant dense<0.000000e+00> : vector<16x128xf32>
    %45 = tpu.matmul %44, %0, %cst_28 {dimension_numbers = #tpu.dot_dimension_numbers<[1], [0], [0], [1], [0, 0, 1, 1], [], []>} : vector<16x8xf32>, vector<8x128xf32>, vector<16x128xf32> -> vector<16x128xf32>
    %46 = arith.mulf %42, %45 : vector<16x128xf32>
    %47 = arith.truncf %18 : vector<16x256xf32> to vector<16x256xbf16>
    %48 = vector.shape_cast %47 : vector<16x256xbf16> to vector<16x1x256xbf16>
    %49 = vector.shape_cast %48 : vector<16x1x256xbf16> to vector<16x1x256xbf16>
    %50 = vector.broadcast %49 : vector<16x1x256xbf16> to vector<16x8x256xbf16>
    %51 = vector.shape_cast %50 : vector<16x8x256xbf16> to vector<128x256xbf16>
    %c0_29 = arith.constant 0 : index
    %c0_30 = arith.constant 0 : index
    %52 = vector.load %arg9[%c0_29, %c0_30] : memref<128x256xbf16, #tpu.memory_space<vmem>>, vector<128x256xbf16>
    %53 = arith.mulf %51, %52 : vector<128x256xbf16>
    %54 = arith.truncf %46 : vector<16x128xf32> to vector<16x128xbf16>
    %cst_31 = arith.constant dense<0.000000e+00> : vector<16x256xf32>
    %55 = tpu.matmul %54, %53, %cst_31 {dimension_numbers = #tpu.dot_dimension_numbers<[1], [0], [0], [1], [0, 0, 1, 1], [], []>} : vector<16x128xbf16>, vector<128x256xbf16>, vector<16x256xf32> -> vector<16x256xf32>
    %c0_32 = arith.constant 0 : index
    %c0_33 = arith.constant 0 : index
    %56 = vector.load %arg10[%c0_32, %c0_33] : memref<256x32xf32, #tpu.memory_space<vmem>>, vector<256x32xf32>
    %cst_34 = arith.constant dense<0.000000e+00> : vector<16x32xf32>
    %57 = tpu.matmul %55, %56, %cst_34 {dimension_numbers = #tpu.dot_dimension_numbers<[1], [0], [0], [1], [0, 0, 1, 1], [], []>} : vector<16x256xf32>, vector<256x32xf32>, vector<16x32xf32> -> vector<16x32xf32>
    %c0_35 = arith.constant 0 : index
    %c0_36 = arith.constant 0 : index
    %58 = vector.load %arg8[%c0_35, %c0_36] : memref<1x32xf32, #tpu.memory_space<vmem>>, vector<1x32xf32>
    %59 = vector.broadcast %58 : vector<1x32xf32> to vector<16x32xf32>
    %60 = arith.addf %57, %59 : vector<16x32xf32>
    %cst_37 = arith.constant 0.000000e+00 : f32
    %61 = vector.broadcast %cst_37 : f32 to vector<16x32xf32>
    %62 = arith.maximumf %60, %61 : vector<16x32xf32>
    %63 = arith.truncf %62 : vector<16x32xf32> to vector<16x32xbf16>
    %c0_38 = arith.constant 0 : index
    %c0_39 = arith.constant 0 : index
    %64 = vector.load %arg11[%c0_38, %c0_39] : memref<32x32xf32, #tpu.memory_space<vmem>>, vector<32x32xf32>
    %65 = arith.truncf %64 : vector<32x32xf32> to vector<32x32xbf16>
    %cst_40 = arith.constant dense<0.000000e+00> : vector<16x32xf32>
    %66 = tpu.matmul %63, %65, %cst_40 {dimension_numbers = #tpu.dot_dimension_numbers<[1], [0], [0], [1], [0, 0, 1, 1], [], []>} : vector<16x32xbf16>, vector<32x32xbf16>, vector<16x32xf32> -> vector<16x32xf32>
    %c0_41 = arith.constant 0 : index
    %c0_42 = arith.constant 0 : index
    %67 = vector.load %arg12[%c0_41, %c0_42] : memref<32x8xf32, #tpu.memory_space<vmem>>, vector<32x8xf32>
    %68 = arith.truncf %67 : vector<32x8xf32> to vector<32x8xbf16>
    %cst_43 = arith.constant dense<0.000000e+00> : vector<16x8xf32>
    %69 = tpu.matmul %63, %68, %cst_43 {dimension_numbers = #tpu.dot_dimension_numbers<[1], [0], [0], [1], [0, 0, 1, 1], [], []>} : vector<16x32xbf16>, vector<32x8xbf16>, vector<16x8xf32> -> vector<16x8xf32>
    %c0_44 = arith.constant 0 : index
    %c0_45 = arith.constant 0 : index
    %70 = vector.load %arg13[%c0_44, %c0_45] : memref<32x8xf32, #tpu.memory_space<vmem>>, vector<32x8xf32>
    %71 = arith.truncf %70 : vector<32x8xf32> to vector<32x8xbf16>
    %cst_46 = arith.constant dense<0.000000e+00> : vector<16x8xf32>
    %72 = tpu.matmul %63, %71, %cst_46 {dimension_numbers = #tpu.dot_dimension_numbers<[1], [0], [0], [1], [0, 0, 1, 1], [], []>} : vector<16x32xbf16>, vector<32x8xbf16>, vector<16x8xf32> -> vector<16x8xf32>
    %cst_47 = arith.constant dense<0.000000e+00> : vector<16x128xf32>
    %73 = tpu.matmul %69, %0, %cst_47 {dimension_numbers = #tpu.dot_dimension_numbers<[1], [0], [0], [1], [0, 0, 1, 1], [], []>} : vector<16x8xf32>, vector<8x128xf32>, vector<16x128xf32> -> vector<16x128xf32>
    %cst_48 = arith.constant dense<0.000000e+00> : vector<16x128xf32>
    %74 = tpu.matmul %72, %0, %cst_48 {dimension_numbers = #tpu.dot_dimension_numbers<[1], [0], [0], [1], [0, 0, 1, 1], [], []>} : vector<16x8xf32>, vector<8x128xf32>, vector<16x128xf32> -> vector<16x128xf32>
    %75 = arith.mulf %1, %74 : vector<16x128xf32>
    %cst_49 = arith.constant dense<0.000000e+00> : vector<128xf32>
    %76 = vector.multi_reduction <add>, %75, %cst_49 [0] : vector<16x128xf32> to vector<128xf32>
    %77 = vector.shape_cast %76 : vector<128xf32> to vector<1x128xf32>
    %78 = vector.broadcast %77 : vector<1x128xf32> to vector<16x128xf32>
    %79 = arith.addf %73, %78 : vector<16x128xf32>
    %cst_50 = arith.constant 0.000000e+00 : f32
    %80 = vector.broadcast %cst_50 : f32 to vector<16x128xf32>
    %81 = arith.cmpf ogt, %79, %80 : vector<16x128xf32>
    %cst_51 = arith.constant 2.000000e-01 : f32
    %82 = vector.broadcast %cst_51 : f32 to vector<16x128xf32>
    %83 = arith.mulf %82, %79 : vector<16x128xf32>
    %84 = arith.select %81, %79, %83 : vector<16x128xi1>, vector<16x128xf32>
    %85 = arith.addf %84, %13 : vector<16x128xf32>
    %cst_52 = arith.constant dense<0xFF800000> : vector<16xf32>
    %86 = vector.multi_reduction <maximumf>, %85, %cst_52 [1] : vector<16x128xf32> to vector<16xf32>
    %87 = vector.shape_cast %86 : vector<16xf32> to vector<16x1xf32>
    %88 = vector.broadcast %87 : vector<16x1xf32> to vector<16x128xf32>
    %89 = arith.subf %85, %88 : vector<16x128xf32>
    %90 = math.exp %89 : vector<16x128xf32>
    %cst_53 = arith.constant dense<0.000000e+00> : vector<16x8xf32>
    %91 = tpu.matmul %90, %2, %cst_53 {dimension_numbers = #tpu.dot_dimension_numbers<[1], [0], [0], [1], [0, 0, 1, 1], [], []>} : vector<16x128xf32>, vector<128x8xf32>, vector<16x8xf32> -> vector<16x8xf32>
    %92 = tpu.reciprocal %91 {approx = true} : vector<16x8xf32> -> vector<16x8xf32>
    %cst_54 = arith.constant dense<0.000000e+00> : vector<16x128xf32>
    %93 = tpu.matmul %92, %0, %cst_54 {dimension_numbers = #tpu.dot_dimension_numbers<[1], [0], [0], [1], [0, 0, 1, 1], [], []>} : vector<16x8xf32>, vector<8x128xf32>, vector<16x128xf32> -> vector<16x128xf32>
    %94 = arith.mulf %90, %93 : vector<16x128xf32>
    %95 = arith.truncf %66 : vector<16x32xf32> to vector<16x32xbf16>
    %96 = vector.shape_cast %95 : vector<16x32xbf16> to vector<16x1x32xbf16>
    %97 = vector.shape_cast %96 : vector<16x1x32xbf16> to vector<16x1x32xbf16>
    %98 = vector.broadcast %97 : vector<16x1x32xbf16> to vector<16x8x32xbf16>
    %99 = vector.shape_cast %98 : vector<16x8x32xbf16> to vector<128x32xbf16>
    %c0_55 = arith.constant 0 : index
    %c0_56 = arith.constant 0 : index
    %100 = vector.load %arg15[%c0_55, %c0_56] : memref<128x32xbf16, #tpu.memory_space<vmem>>, vector<128x32xbf16>
    %101 = arith.mulf %99, %100 : vector<128x32xbf16>
    %102 = arith.truncf %94 : vector<16x128xf32> to vector<16x128xbf16>
    %cst_57 = arith.constant dense<0.000000e+00> : vector<16x32xf32>
    %103 = tpu.matmul %102, %101, %cst_57 {dimension_numbers = #tpu.dot_dimension_numbers<[1], [0], [0], [1], [0, 0, 1, 1], [], []>} : vector<16x128xbf16>, vector<128x32xbf16>, vector<16x32xf32> -> vector<16x32xf32>
    %c0_58 = arith.constant 0 : index
    %c0_59 = arith.constant 0 : index
    %104 = vector.load %arg16[%c0_58, %c0_59] : memref<32x4xf32, #tpu.memory_space<vmem>>, vector<32x4xf32>
    %cst_60 = arith.constant dense<0.000000e+00> : vector<16x4xf32>
    %105 = tpu.matmul %103, %104, %cst_60 {dimension_numbers = #tpu.dot_dimension_numbers<[1], [0], [0], [1], [0, 0, 1, 1], [], []>} : vector<16x32xf32>, vector<32x4xf32>, vector<16x4xf32> -> vector<16x4xf32>
    %c0_61 = arith.constant 0 : index
    %c0_62 = arith.constant 0 : index
    %106 = vector.load %arg14[%c0_61, %c0_62] : memref<1x4xf32, #tpu.memory_space<vmem>>, vector<1x4xf32>
    %107 = vector.broadcast %106 : vector<1x4xf32> to vector<16x4xf32>
    %108 = arith.addf %105, %107 : vector<16x4xf32>
    %c0_63 = arith.constant 0 : index
    %c0_64 = arith.constant 0 : index
    %109 = vector.load %arg17[%c0_63, %c0_64] : memref<16x4xf32, #tpu.memory_space<vmem>>, vector<16x4xf32>
    tpu.vector_store %arg17[%c0_63, %c0_64], %108 {strides = array<i32>} : memref<16x4xf32, #tpu.memory_space<vmem>>, vector<16x4xf32>,
    return
  }
}

</mosaic_0001>

<llo_original>
// kernel: gat_forward.1
$region0: #{gat_forward.1}
  #allocation0 [shape = 'u32[]', space=smem, size = 0x4, offset = 0x4, fixed_abs, tag = 'smem constant byte address 0x4 - core index']
  #allocation1 [shape = 'u32[144,128]{1,0:T(1,128)}', space=vmem, size = 0x12000, scoped, tag = 'internal scratch']
  %s0 = inlined_call_operand.vmem [shape: f32[16,8], index: 0, kind: input, shape index: {}]
  %s1 = inlined_call_operand.vmem [shape: s8[16,16], index: 1, kind: input, shape index: {}]
  %s2 = inlined_call_operand.vmem [shape: f32[8,128], index: 2, kind: input, shape index: {}]
  %s3 = inlined_call_operand.vmem [shape: f32[16,128], index: 3, kind: input, shape index: {}]
  %s4 = inlined_call_operand.vmem [shape: f32[128,8], index: 4, kind: input, shape index: {}]
  %s5 = inlined_call_operand.vmem [shape: f32[8,256], index: 5, kind: input, shape index: {}]
  %s6 = inlined_call_operand.vmem [shape: f32[8,8], index: 6, kind: input, shape index: {}]
  %s7 = inlined_call_operand.vmem [shape: f32[8,8], index: 7, kind: input, shape index: {}]
  %s8 = inlined_call_operand.vmem [shape: f32[1,32], index: 8, kind: input, shape index: {}]
  %s9 = inlined_call_operand.vmem [shape: bf16[128,256], index: 9, kind: input, shape index: {}]
  %s10 = inlined_call_operand.vmem [shape: f32[256,32], index: 10, kind: input, shape index: {}]
  %s11 = inlined_call_operand.vmem [shape: f32[32,32], index: 11, kind: input, shape index: {}]
  %s12 = inlined_call_operand.vmem [shape: f32[32,8], index: 12, kind: input, shape index: {}]
  %s13 = inlined_call_operand.vmem [shape: f32[32,8], index: 13, kind: input, shape index: {}]
  %s14 = inlined_call_operand.vmem [shape: f32[1,4], index: 14, kind: input, shape index: {}]
  %s15 = inlined_call_operand.vmem [shape: bf16[128,32], index: 15, kind: input, shape index: {}]
  %s16 = inlined_call_operand.vmem [shape: f32[32,4], index: 16, kind: input, shape index: {}]
  %s17 = inlined_call_operand.vmem [shape: f32[16,4], index: 17, kind: output, shape index: {}]
  %s18 = sld [smem:[#allocation0]]
  $region78: #{gat_forward.1} parent=0
    _
  %s20 = ssub.s32 1, %s18
  %s21 = scalar_select 0, %s20, %s18
  // Predicated region
  $region2: #{gat_forward.1} parent=0 // pred_check
    _
  $region3: #{gat_forward.1} parent=0 // pred_check_branch
    %23 = sbr.rel (0) target = $region5
  $region4: #{gat_forward.1} parent=0 // pred_region
    _
  $region5: #{gat_forward.1} parent=0 // pred_fallthru
    _
  // Predicated region
  $region6: #{gat_forward.1} parent=0 // pred_check
    _
  $region7: #{gat_forward.1} parent=0 // pred_check_branch
    %25 = sbr.rel (0) target = $region9
  $region8: #{gat_forward.1} parent=0 // pred_region
    _
  $region9: #{gat_forward.1} parent=0 // pred_fallthru
    _
  // Predicated region
  $region10: #{gat_forward.1} parent=0 // pred_check
    _
  $region11: #{gat_forward.1} parent=0 // pred_check_branch
    %27 = sbr.rel (0) target = $region13
  $region12: #{gat_forward.1} parent=0 // pred_region
    _
  $region13: #{gat_forward.1} parent=0 // pred_fallthru
    _
  // Predicated region
  $region14: #{gat_forward.1} parent=0 // pred_check
    _
  $region15: #{gat_forward.1} parent=0 // pred_check_branch
    %29 = sbr.rel (0) target = $region17
  $region16: #{gat_forward.1} parent=0 // pred_region
    _
  $region17: #{gat_forward.1} parent=0 // pred_fallthru
    _
  // Predicated region
  $region18: #{gat_forward.1} parent=0 // pred_check
    _
  $region19: #{gat_forward.1} parent=0 // pred_check_branch
    %31 = sbr.rel (0) target = $region21
  $region20: #{gat_forward.1} parent=0 // pred_region
    _
  $region21: #{gat_forward.1} parent=0 // pred_fallthru
    _
  // Predicated region
  $region22: #{gat_forward.1} parent=0 // pred_check
    _
  $region23: #{gat_forward.1} parent=0 // pred_check_branch
    %33 = sbr.rel (0) target = $region25
  $region24: #{gat_forward.1} parent=0 // pred_region
    _
  $region25: #{gat_forward.1} parent=0 // pred_fallthru
    _
  // Predicated region
  $region26: #{gat_forward.1} parent=0 // pred_check
    _
  $region27: #{gat_forward.1} parent=0 // pred_check_branch
    %35 = sbr.rel (0) target = $region29
  $region28: #{gat_forward.1} parent=0 // pred_region
    _
  $region29: #{gat_forward.1} parent=0 // pred_fallthru
    _
  // Predicated region
  $region30: #{gat_forward.1} parent=0 // pred_check
    _
  $region31: #{gat_forward.1} parent=0 // pred_check_branch
    %37 = sbr.rel (0) target = $region33
  $region32: #{gat_forward.1} parent=0 // pred_region
    _
  $region33: #{gat_forward.1} parent=0 // pred_fallthru
    _
  // Predicated region
  $region34: #{gat_forward.1} parent=0 // pred_check
    _
  $region35: #{gat_forward.1} parent=0 // pred_check_branch
    %39 = sbr.rel (0) target = $region37
  $region36: #{gat_forward.1} parent=0 // pred_region
    _
  $region37: #{gat_forward.1} parent=0 // pred_fallthru
    _
  // Predicated region
  $region38: #{gat_forward.1} parent=0 // pred_check
    _
  $region39: #{gat_forward.1} parent=0 // pred_check_branch
    %41 = sbr.rel (0) target = $region41
  $region40: #{gat_forward.1} parent=0 // pred_region
    _
  $region41: #{gat_forward.1} parent=0 // pred_fallthru
    _
  // Predicated region
  $region42: #{gat_forward.1} parent=0 // pred_check
    _
  $region43: #{gat_forward.1} parent=0 // pred_check_branch
    %43 = sbr.rel (0) target = $region45
  $region44: #{gat_forward.1} parent=0 // pred_region
    _
  $region45: #{gat_forward.1} parent=0 // pred_fallthru
    _
  // Predicated region
  $region46: #{gat_forward.1} parent=0 // pred_check
    _
  $region47: #{gat_forward.1} parent=0 // pred_check_branch
    %45 = sbr.rel (0) target = $region49
  $region48: #{gat_forward.1} parent=0 // pred_region
    _
  $region49: #{gat_forward.1} parent=0 // pred_fallthru
    _
  // Predicated region
  $region50: #{gat_forward.1} parent=0 // pred_check
    _
  $region51: #{gat_forward.1} parent=0 // pred_check_branch
    %47 = sbr.rel (0) target = $region53
  $region52: #{gat_forward.1} parent=0 // pred_region
    _
  $region53: #{gat_forward.1} parent=0 // pred_fallthru
    _
  // Predicated region
  $region54: #{gat_forward.1} parent=0 // pred_check
    _
  $region55: #{gat_forward.1} parent=0 // pred_check_branch
    %49 = sbr.rel (0) target = $region57
  $region56: #{gat_forward.1} parent=0 // pred_region
    _
  $region57: #{gat_forward.1} parent=0 // pred_fallthru
    _
  // Predicated region
  $region58: #{gat_forward.1} parent=0 // pred_check
    _
  $region59: #{gat_forward.1} parent=0 // pred_check_branch
    %51 = sbr.rel (0) target = $region61
  $region60: #{gat_forward.1} parent=0 // pred_region
    _
  $region61: #{gat_forward.1} parent=0 // pred_fallthru
    _
  // Predicated region
  $region62: #{gat_forward.1} parent=0 // pred_check
    _
  $region63: #{gat_forward.1} parent=0 // pred_check_branch
    %53 = sbr.rel (0) target = $region65
  $region64: #{gat_forward.1} parent=0 // pred_region
    _
  $region65: #{gat_forward.1} parent=0 // pred_fallthru
    _
  // Predicated region
  $region66: #{gat_forward.1} parent=0 // pred_check
    _
  $region67: #{gat_forward.1} parent=0 // pred_check_branch
    %55 = sbr.rel (0) target = $region69
  $region68: #{gat_forward.1} parent=0 // pred_region
    _
  $region69: #{gat_forward.1} parent=0 // pred_fallthru
    _
  %v59 = vld [vmem:[%s2] sm:$0xff]
  %v60 = vld [vmem:[%s3] sm:$0xff]
  %v61 = vld [vmem:[%s3 + $0x8] sm:$0xff]
  %v62 = vld [vmem:[%s4] sm:$0xff]
  %v63 = vld [vmem:[%s4 + $0x8] sm:$0xff]
  %v64 = vld [vmem:[%s4 + $0x10] sm:$0xff]
  %v65 = vld [vmem:[%s4 + $0x18] sm:$0xff]
  %v66 = vld [vmem:[%s4 + $0x20] sm:$0xff]
  %v67 = vld [vmem:[%s4 + $0x28] sm:$0xff]
  %v68 = vld [vmem:[%s4 + $0x30] sm:$0xff]
  %v69 = vld [vmem:[%s4 + $0x38] sm:$0xff]
  %v70 = vld [vmem:[%s4 + $0x40] sm:$0xff]
  %v71 = vld [vmem:[%s4 + $0x48] sm:$0xff]
  %v72 = vld [vmem:[%s4 + $0x50] sm:$0xff]
  %v73 = vld [vmem:[%s4 + $0x58] sm:$0xff]
  %v74 = vld [vmem:[%s4 + $0x60] sm:$0xff]
  %v75 = vld [vmem:[%s4 + $0x68] sm:$0xff]
  %v76 = vld [vmem:[%s4 + $0x70] sm:$0xff]
  %v77 = vld [vmem:[%s4 + $0x78] sm:$0xff]
  %v78 = vld [vmem:[%s1] sm:$0x3]
  %v79 = vld [vmem:[%s1 + $0x2] sm:$0x3]
  %vm80 = vnez %v78
  %vm81 = vnez %v79
  %v82 = vsel %vm80, 16843009, 0
  %v83 = vsel %vm81, 16843009, 0
  %v84 = vunpack.c.0.s8 %v82
  %v85 = vunpack.c.0.s8 %v83
  %vm86 = vcmp.ne.s32.totalorder %v84, 0
  %vm87 = vcmp.ne.s32.totalorder %v85, 0
  %v88 = vsel %vm86, 1, 0
  %v89 = vsel %vm87, 1, 0
  %v90 = vcvt.s32.f32 %v88
  %v91 = vcvt.s32.f32 %v89
  %vm92 = vcmask 130048
  %v94 = vsel %vm92, %v90, 0
  %v97 = vsel %vm92, %v91, 0
  %99 = vmatprep.subr.mxu0 0.0
  %100 = vmatpush1.msra.mxu0 %v60
  %101 = vmatprep.subr.mxu0 0.0
  %102 = vmatpush1.msra.mxu0 %v61
  %103 = vmatprep.subr.mxu0 0.0
  %104 = vmatpush1.msra.mxu0 0.0
  %105 = vmatprep.subr.mxu0 0.0
  %106 = vmatpush1.msra.mxu0 0.0
  %107 = vmatprep.subr.mxu0 0.0
  %108 = vmatpush1.msra.mxu0 0.0
  %109 = vmatprep.subr.mxu0 0.0
  %110 = vmatpush1.msra.mxu0 0.0
  %111 = vmatprep.subr.mxu0 0.0
  %112 = vmatpush1.msra.mxu0 0.0
  %113 = vmatprep.subr.mxu0 0.0
  %114 = vmatpush1.msra.mxu0 0.0
  %115 = vmatprep.subr.mxu0 0.0
  %116 = vmatpush1.msra.mxu0 0.0
  %117 = vmatprep.subr.mxu0 0.0
  %118 = vmatpush1.msra.mxu0 0.0
  %119 = vmatprep.subr.mxu0 0.0
  %120 = vmatpush1.msra.mxu0 0.0
  %121 = vmatprep.subr.mxu0 0.0
  %122 = vmatpush1.msra.mxu0 0.0
  %123 = vmatprep.subr.mxu0 0.0
  %124 = vmatpush1.msra.mxu0 0.0
  %125 = vmatprep.subr.mxu0 0.0
  %126 = vmatpush1.msra.mxu0 0.0
  %127 = vmatprep.subr.mxu0 0.0
  %128 = vmatpush1.msra.mxu0 0.0
  %129 = vmatprep.subr.mxu0 0.0
  %130 = vmatpush1.msra.mxu0 0.0
  %131 = vmatprep.subr.mxu0 0.0
  %132 = vmatpush1.msra.mxu0 0.0
  %133 = vmatprep.subr.mxu0 0.0
  %134 = vmatpush1.msra.mxu0 0.0
  %135 = vmatprep.subr.mxu0 0.0
  %136 = vmatpush1.msra.mxu0 0.0
  %137 = vmatprep.subr.mxu0 0.0
  %138 = vmatpush1.msra.mxu0 0.0
  %139 = vmatprep.subr.mxu0 0.0
  %140 = vmatpush1.msra.mxu0 0.0
  %141 = vmatprep.subr.mxu0 0.0
  %142 = vmatpush1.msra.mxu0 0.0
  %143 = vmatprep.subr.mxu0 0.0
  %144 = vmatpush1.msra.mxu0 0.0
  %145 = vmatprep.subr.mxu0 0.0
  %146 = vmatpush1.msra.mxu0 0.0
  %147 = vmatprep.subr.mxu0 0.0
  %148 = vmatpush1.msra.mxu0 0.0
  %149 = vmatprep.subr.mxu0 0.0
  %150 = vmatpush1.msra.mxu0 0.0
  %151 = vmatprep.subr.mxu0 0.0
  %152 = vmatpush1.msra.mxu0 0.0
  %153 = vmatprep.subr.mxu0 0.0
  %154 = vmatpush1.msra.mxu0 0.0
  %155 = vmatprep.subr.mxu0 0.0
  %156 = vmatpush1.msra.mxu0 0.0
  %157 = vmatprep.subr.mxu0 0.0
  %158 = vmatpush1.msra.mxu0 0.0
  %159 = vmatprep.subr.mxu0 0.0
  %160 = vmatpush1.msra.mxu0 0.0
  %161 = vmatprep.subr.mxu0 0.0
  %162 = vmatpush1.msra.mxu0 0.0
  %163 = vmatprep.mubr.f32.mxu0 0.0
  %164 = vmatmul.mubr.f32.gmra.mrb[0].mxu0 %v94
  %v165 = vpop.f32.mrb[0].mxu0
  %v166 = vadd.f32 0.0, %v165
  %v167 = vpop.f32.mrb[0].mxu0
  %168 = vmatprep.mubr.f32.mxu0 0.0
  %169 = vmatmul.mubr.f32.gmra.mrb[0].mxu0 %v97
  %v170 = vpop.f32.mrb[0].mxu0
  %v171 = vadd.f32 0.0, %v170
  %v172 = vpop.f32.mrb[0].mxu0
  %173 = vdwg.mxu0
  %vm174 = vcmp.gt.f32.partialorder %v166, 0.5
  %vm175 = vcmp.gt.f32.partialorder %v171, 0.5
  %v176 = vsel %vm174, 0.0, -1e+30
  %v177 = vsel %vm175, 0.0, -1e+30
  %v178 = vld [vmem:[%s0] sm:$0xff]
  %v179 = vld [vmem:[%s0 + $0x8] sm:$0xff]
  %v180 = vpack.c.bf16 %v179, %v178
  %v181 = vld [vmem:[%s5] sm:$0xff]
  %v182 = vld [vmem:[%s5 + $0x8] sm:$0xff]
  %v183 = vpack.c.bf16 %v181, %v181
  %v184 = vpack.c.bf16 %v182, %v182
  %vm185 = vcmask 64512
  %v187 = vsel %vm185, %v180, 0
  %vm189 = vcmask 1043456
  %v191 = vsel %vm189, %v183, 0
  %v194 = vsel %vm189, %v184, 0
  %196 = vmatprep.subr.bf16.mxu0 %v194
  %197 = vmatpush1.bf16.msra.mxu0 %v191
  %198 = vmatprep.subr.bf16.mxu0 0
  %199 = vmatpush1.bf16.msra.mxu0 0
  %200 = vmatprep.subr.bf16.mxu0 0
  %201 = vmatpush1.bf16.msra.mxu0 0
  %202 = vmatprep.subr.bf16.mxu0 0
  %203 = vmatpush1.bf16.msra.mxu0 0
  %204 = vmatprep.subr.bf16.mxu0 0
  %205 = vmatpush1.bf16.msra.mxu0 0
  %206 = vmatprep.subr.bf16.mxu0 0
  %207 = vmatpush1.bf16.msra.mxu0 0
  %208 = vmatprep.subr.bf16.mxu0 0
  %209 = vmatpush1.bf16.msra.mxu0 0
  %210 = vmatprep.subr.bf16.mxu0 0
  %211 = vmatpush1.bf16.msra.mxu0 0
  %212 = vmatprep.subr.bf16.mxu0 0
  %213 = vmatpush1.bf16.msra.mxu0 0
  %214 = vmatprep.subr.bf16.mxu0 0
  %215 = vmatpush1.bf16.msra.mxu0 0
  %216 = vmatprep.subr.bf16.mxu0 0
  %217 = vmatpush1.bf16.msra.mxu0 0
  %218 = vmatprep.subr.bf16.mxu0 0
  %219 = vmatpush1.bf16.msra.mxu0 0
  %220 = vmatprep.subr.bf16.mxu0 0
  %221 = vmatpush1.bf16.msra.mxu0 0
  %222 = vmatprep.subr.bf16.mxu0 0
  %223 = vmatpush1.bf16.msra.mxu0 0
  %224 = vmatprep.subr.bf16.mxu0 0
  %225 = vmatpush1.bf16.msra.mxu0 0
  %226 = vmatprep.subr.bf16.mxu0 0
  %227 = vmatpush1.bf16.msra.mxu0 0
  %228 = vmatprep.mubr.bf16.mxu0 0
  %229 = vmatmul.mubr.bf16.gmra.mrb[0].mxu0 %v187
  %v230 = vpop.f32.mrb[0].mxu0
  %v231 = vadd.f32 0.0, %v230
  %v232 = vpop.f32.mrb[0].mxu0
  %v233 = vadd.f32 0.0, %v232
  %v234 = vpop.f32.mrb[0].mxu0
  %v235 = vadd.f32 0.0, %v234
  %v236 = vpop.f32.mrb[0].mxu0
  %v237 = vadd.f32 0.0, %v236
  %238 = vdwg.mxu0
  %v239 = vld [vmem:[%s6] sm:$0xff]
  %v240 = vpack.c.bf16 %v239, %v239
  %v242 = vsel %vm189, %v240, 0
  %244 = vmatprep.subr.bf16.mxu0 0
  %245 = vmatpush1.bf16.msra.mxu0 %v242
  %246 = vmatprep.subr.bf16.mxu0 0
  %247 = vmatpush1.bf16.msra.mxu0 0
  %248 = vmatprep.subr.bf16.mxu0 0
  %249 = vmatpush1.bf16.msra.mxu0 0
  %250 = vmatprep.subr.bf16.mxu0 0
  %251 = vmatpush1.bf16.msra.mxu0 0
  %252 = vmatprep.subr.bf16.mxu0 0
  %253 = vmatpush1.bf16.msra.mxu0 0
  %254 = vmatprep.subr.bf16.mxu0 0
  %255 = vmatpush1.bf16.msra.mxu0 0
  %256 = vmatprep.subr.bf16.mxu0 0
  %257 = vmatpush1.bf16.msra.mxu0 0
  %258 = vmatprep.subr.bf16.mxu0 0
  %259 = vmatpush1.bf16.msra.mxu0 0
  %260 = vmatprep.subr.bf16.mxu0 0
  %261 = vmatpush1.bf16.msra.mxu0 0
  %262 = vmatprep.subr.bf16.mxu0 0
  %263 = vmatpush1.bf16.msra.mxu0 0
  %264 = vmatprep.subr.bf16.mxu0 0
  %265 = vmatpush1.bf16.msra.mxu0 0
  %266 = vmatprep.subr.bf16.mxu0 0
  %267 = vmatpush1.bf16.msra.mxu0 0
  %268 = vmatprep.subr.bf16.mxu0 0
  %269 = vmatpush1.bf16.msra.mxu0 0
  %270 = vmatprep.subr.bf16.mxu0 0
  %271 = vmatpush1.bf16.msra.mxu0 0
  %272 = vmatprep.subr.bf16.mxu0 0
  %273 = vmatpush1.bf16.msra.mxu0 0
  %274 = vmatprep.subr.bf16.mxu0 0
  %275 = vmatpush1.bf16.msra.mxu0 0
  %276 = vmatprep.mubr.bf16.mxu0 0
  %277 = vmatmul.mubr.bf16.gmra.mrb[0].mxu0 %v187
  %v278 = vpop.f32.mrb[0].mxu0
  %v279 = vadd.f32 0.0, %v278
  %v280 = vpop.f32.mrb[0].mxu0
  %v281 = vpop.f32.mrb[0].mxu0
  %v282 = vadd.f32 0.0, %v281
  %v283 = vpop.f32.mrb[0].mxu0
  %284 = vdwg.mxu0
  %v285 = vld [vmem:[%s7] sm:$0xff]
  %v286 = vpack.c.bf16 %v285, %v285
  %v288 = vsel %vm189, %v286, 0
  %290 = vmatprep.subr.bf16.mxu0 0
  %291 = vmatpush1.bf16.msra.mxu0 %v288
  %292 = vmatprep.subr.bf16.mxu0 0
  %293 = vmatpush1.bf16.msra.mxu0 0
  %294 = vmatprep.subr.bf16.mxu0 0
  %295 = vmatpush1.bf16.msra.mxu0 0
  %296 = vmatprep.subr.bf16.mxu0 0
  %297 = vmatpush1.bf16.msra.mxu0 0
  %298 = vmatprep.subr.bf16.mxu0 0
  %299 = vmatpush1.bf16.msra.mxu0 0
  %300 = vmatprep.subr.bf16.mxu0 0
  %301 = vmatpush1.bf16.msra.mxu0 0
  %302 = vmatprep.subr.bf16.mxu0 0
  %303 = vmatpush1.bf16.msra.mxu0 0
  %304 = vmatprep.subr.bf16.mxu0 0
  %305 = vmatpush1.bf16.msra.mxu0 0
  %306 = vmatprep.subr.bf16.mxu0 0
  %307 = vmatpush1.bf16.msra.mxu0 0
  %308 = vmatprep.subr.bf16.mxu0 0
  %309 = vmatpush1.bf16.msra.mxu0 0
  %310 = vmatprep.subr.bf16.mxu0 0
  %311 = vmatpush1.bf16.msra.mxu0 0
  %312 = vmatprep.subr.bf16.mxu0 0
  %313 = vmatpush1.bf16.msra.mxu0 0
  %314 = vmatprep.subr.bf16.mxu0 0
  %315 = vmatpush1.bf16.msra.mxu0 0
  %316 = vmatprep.subr.bf16.mxu0 0
  %317 = vmatpush1.bf16.msra.mxu0 0
  %318 = vmatprep.subr.bf16.mxu0 0
  %319 = vmatpush1.bf16.msra.mxu0 0
  %320 = vmatprep.subr.bf16.mxu0 0
  %321 = vmatpush1.bf16.msra.mxu0 0
  %322 = vmatprep.mubr.bf16.mxu0 0
  %323 = vmatmul.mubr.bf16.gmra.mrb[0].mxu0 %v187
  %v324 = vpop.f32.mrb[0].mxu0
  %v325 = vadd.f32 0.0, %v324
  %v326 = vpop.f32.mrb[0].mxu0
  %v327 = vpop.f32.mrb[0].mxu0
  %v328 = vadd.f32 0.0, %v327
  %v329 = vpop.f32.mrb[0].mxu0
  %330 = vdwg.mxu0
  %v332 = vsel %vm185, %v325, 0
  %v335 = vsel %vm185, %v328, 0
  %337 = vmatprep.subr.mxu0 0.0
  %338 = vmatpush1.msra.mxu0 %v59
  %339 = vmatprep.subr.mxu0 0.0
  %340 = vmatpush1.msra.mxu0 0.0
  %341 = vmatprep.subr.mxu0 0.0
  %342 = vmatpush1.msra.mxu0 0.0
  %343 = vmatprep.subr.mxu0 0.0
  %344 = vmatpush1.msra.mxu0 0.0
  %345 = vmatprep.subr.mxu0 0.0
  %346 = vmatpush1.msra.mxu0 0.0
  %347 = vmatprep.subr.mxu0 0.0
  %348 = vmatpush1.msra.mxu0 0.0
  %349 = vmatprep.subr.mxu0 0.0
  %350 = vmatpush1.msra.mxu0 0.0
  %351 = vmatprep.subr.mxu0 0.0
  %352 = vmatpush1.msra.mxu0 0.0
  %353 = vmatprep.subr.mxu0 0.0
  %354 = vmatpush1.msra.mxu0 0.0
  %355 = vmatprep.subr.mxu0 0.0
  %356 = vmatpush1.msra.mxu0 0.0
  %357 = vmatprep.subr.mxu0 0.0
  %358 = vmatpush1.msra.mxu0 0.0
  %359 = vmatprep.subr.mxu0 0.0
  %360 = vmatpush1.msra.mxu0 0.0
  %361 = vmatprep.subr.mxu0 0.0
  %362 = vmatpush1.msra.mxu0 0.0
  %363 = vmatprep.subr.mxu0 0.0
  %364 = vmatpush1.msra.mxu0 0.0
  %365 = vmatprep.subr.mxu0 0.0
  %366 = vmatpush1.msra.mxu0 0.0
  %367 = vmatprep.subr.mxu0 0.0
  %368 = vmatpush1.msra.mxu0 0.0
  %369 = vmatprep.subr.mxu0 0.0
  %370 = vmatpush1.msra.mxu0 0.0
  %371 = vmatprep.subr.mxu0 0.0
  %372 = vmatpush1.msra.mxu0 0.0
  %373 = vmatprep.subr.mxu0 0.0
  %374 = vmatpush1.msra.mxu0 0.0
  %375 = vmatprep.subr.mxu0 0.0
  %376 = vmatpush1.msra.mxu0 0.0
  %377 = vmatprep.subr.mxu0 0.0
  %378 = vmatpush1.msra.mxu0 0.0
  %379 = vmatprep.subr.mxu0 0.0
  %380 = vmatpush1.msra.mxu0 0.0
  %381 = vmatprep.subr.mxu0 0.0
  %382 = vmatpush1.msra.mxu0 0.0
  %383 = vmatprep.subr.mxu0 0.0
  %384 = vmatpush1.msra.mxu0 0.0
  %385 = vmatprep.subr.mxu0 0.0
  %386 = vmatpush1.msra.mxu0 0.0
  %387 = vmatprep.subr.mxu0 0.0
  %388 = vmatpush1.msra.mxu0 0.0
  %389 = vmatprep.subr.mxu0 0.0
  %390 = vmatpush1.msra.mxu0 0.0
  %391 = vmatprep.subr.mxu0 0.0
  %392 = vmatpush1.msra.mxu0 0.0
  %393 = vmatprep.subr.mxu0 0.0
  %394 = vmatpush1.msra.mxu0 0.0
  %395 = vmatprep.subr.mxu0 0.0
  %396 = vmatpush1.msra.mxu0 0.0
  %397 = vmatprep.subr.mxu0 0.0
  %398 = vmatpush1.msra.mxu0 0.0
  %399 = vmatprep.subr.mxu0 0.0
  %400 = vmatpush1.msra.mxu0 0.0
  %401 = vmatprep.mubr.f32.mxu0 0.0
  %402 = vmatmul.mubr.f32.gmra.mrb[0].mxu0 %v332
  %v403 = vpop.f32.mrb[0].mxu0
  %v404 = vadd.f32 0.0, %v403
  %v405 = vpop.f32.mrb[0].mxu0
  %406 = vmatprep.mubr.f32.mxu0 0.0
  %407 = vmatmul.mubr.f32.gmra.mrb[0].mxu0 %v335
  %v408 = vpop.f32.mrb[0].mxu0
  %v409 = vadd.f32 0.0, %v408
  %v410 = vpop.f32.mrb[0].mxu0
  %411 = vdwg.mxu0
  %v412 = vmul.f32 %v60, %v404
  %v413 = vmul.f32 %v61, %v409
  %v414 = vadd.f32 %v412, %v413
  %v415 = vrot.slane %v414, 4
  %v416 = vadd.f32 %v414, %v415
  %v417 = vrot.slane %v416, 2
  %v418 = vadd.f32 %v416, %v417
  %v419 = vrot.slane %v418, 1
  %v420 = vadd.f32 %v418, %v419
  %v422 = vsel %vm185, %v279, 0
  %v425 = vsel %vm185, %v282, 0
  %427 = vmatprep.subr.mxu0 0.0
  %428 = vmatpush1.msra.mxu0 %v59
  %429 = vmatprep.subr.mxu0 0.0
  %430 = vmatpush1.msra.mxu0 0.0
  %431 = vmatprep.subr.mxu0 0.0
  %432 = vmatpush1.msra.mxu0 0.0
  %433 = vmatprep.subr.mxu0 0.0
  %434 = vmatpush1.msra.mxu0 0.0
  %435 = vmatprep.subr.mxu0 0.0
  %436 = vmatpush1.msra.mxu0 0.0
  %437 = vmatprep.subr.mxu0 0.0
  %438 = vmatpush1.msra.mxu0 0.0
  %439 = vmatprep.subr.mxu0 0.0
  %440 = vmatpush1.msra.mxu0 0.0
  %441 = vmatprep.subr.mxu0 0.0
  %442 = vmatpush1.msra.mxu0 0.0
  %443 = vmatprep.subr.mxu0 0.0
  %444 = vmatpush1.msra.mxu0 0.0
  %445 = vmatprep.subr.mxu0 0.0
  %446 = vmatpush1.msra.mxu0 0.0
  %447 = vmatprep.subr.mxu0 0.0
  %448 = vmatpush1.msra.mxu0 0.0
  %449 = vmatprep.subr.mxu0 0.0
  %450 = vmatpush1.msra.mxu0 0.0
  %451 = vmatprep.subr.mxu0 0.0
  %452 = vmatpush1.msra.mxu0 0.0
  %453 = vmatprep.subr.mxu0 0.0
  %454 = vmatpush1.msra.mxu0 0.0
  %455 = vmatprep.subr.mxu0 0.0
  %456 = vmatpush1.msra.mxu0 0.0
  %457 = vmatprep.subr.mxu0 0.0
  %458 = vmatpush1.msra.mxu0 0.0
  %459 = vmatprep.subr.mxu0 0.0
  %460 = vmatpush1.msra.mxu0 0.0
  %461 = vmatprep.subr.mxu0 0.0
  %462 = vmatpush1.msra.mxu0 0.0
  %463 = vmatprep.subr.mxu0 0.0
  %464 = vmatpush1.msra.mxu0 0.0
  %465 = vmatprep.subr.mxu0 0.0
  %466 = vmatpush1.msra.mxu0 0.0
  %467 = vmatprep.subr.mxu0 0.0
  %468 = vmatpush1.msra.mxu0 0.0
  %469 = vmatprep.subr.mxu0 0.0
  %470 = vmatpush1.msra.mxu0 0.0
  %471 = vmatprep.subr.mxu0 0.0
  %472 = vmatpush1.msra.mxu0 0.0
  %473 = vmatprep.subr.mxu0 0.0
  %474 = vmatpush1.msra.mxu0 0.0
  %475 = vmatprep.subr.mxu0 0.0
  %476 = vmatpush1.msra.mxu0 0.0
  %477 = vmatprep.subr.mxu0 0.0
  %478 = vmatpush1.msra.mxu0 0.0
  %479 = vmatprep.subr.mxu0 0.0
  %480 = vmatpush1.msra.mxu0 0.0
  %481 = vmatprep.subr.mxu0 0.0
  %482 = vmatpush1.msra.mxu0 0.0
  %483 = vmatprep.subr.mxu0 0.0
  %484 = vmatpush1.msra.mxu0 0.0
  %485 = vmatprep.subr.mxu0 0.0
  %486 = vmatpush1.msra.mxu0 0.0
  %487 = vmatprep.subr.mxu0 0.0
  %488 = vmatpush1.msra.mxu0 0.0
  %489 = vmatprep.subr.mxu0 0.0
  %490 = vmatpush1.msra.mxu0 0.0
  %491 = vmatprep.mubr.f32.mxu0 0.0
  %492 = vmatmul.mubr.f32.gmra.mrb[0].mxu0 %v422
  %v493 = vpop.f32.mrb[0].mxu0
  %v494 = vadd.f32 %v420, %v493
  %v495 = vpop.f32.mrb[0].mxu0
  %496 = vmatprep.mubr.f32.mxu0 0.0
  %497 = vmatmul.mubr.f32.gmra.mrb[0].mxu0 %v425
  %v498 = vpop.f32.mrb[0].mxu0
  %v499 = vadd.f32 %v420, %v498
  %v500 = vpop.f32.mrb[0].mxu0
  %501 = vdwg.mxu0
  %vm502 = vcmp.gt.f32.partialorder %v494, 0.0
  %vm503 = vcmp.gt.f32.partialorder %v499, 0.0
  %v504 = vmul.f32 %v494, 0.2
  %v505 = vmul.f32 %v499, 0.2
  %v506 = vsel %vm502, %v494, %v504
  %v507 = vsel %vm503, %v499, %v505
  %v508 = vadd.f32 %v506, %v176
  %v509 = vadd.f32 %v507, %v177
  %510 = vmax.xlane.f32.xlu0 %v508
  %v511 = vpop.xlane.xlu0 %510
  %512 = vmax.xlane.f32.xlu0 %v509
  %v513 = vpop.xlane.xlu0 %512
  %v514 = vsub.f32 %v508, %v511
  %v515 = vsub.f32 %v509, %v513
  %v516 = vmul.f32 %v514, 1.442695
  %v517 = vpow.pop %v516
  %v518 = vmul.f32 %v515, 1.442695
  %v519 = vpow.pop %v518
  %520 = vmatprep.subr.mxu0 0.0
  %521 = vmatpush1.msra.mxu0 %v62
  %522 = vmatprep.subr.mxu0 0.0
  %523 = vmatpush1.msra.mxu0 %v63
  %524 = vmatprep.subr.mxu0 0.0
  %525 = vmatpush1.msra.mxu0 %v64
  %526 = vmatprep.subr.mxu0 0.0
  %527 = vmatpush1.msra.mxu0 %v65
  %528 = vmatprep.subr.mxu0 0.0
  %529 = vmatpush1.msra.mxu0 %v66
  %530 = vmatprep.subr.mxu0 0.0
  %531 = vmatpush1.msra.mxu0 %v67
  %532 = vmatprep.subr.mxu0 0.0
  %533 = vmatpush1.msra.mxu0 %v68
  %534 = vmatprep.subr.mxu0 0.0
  %535 = vmatpush1.msra.mxu0 %v69
  %536 = vmatprep.subr.mxu0 0.0
  %537 = vmatpush1.msra.mxu0 %v70
  %538 = vmatprep.subr.mxu0 0.0
  %539 = vmatpush1.msra.mxu0 %v71
  %540 = vmatprep.subr.mxu0 0.0
  %541 = vmatpush1.msra.mxu0 %v72
  %542 = vmatprep.subr.mxu0 0.0
  %543 = vmatpush1.msra.mxu0 %v73
  %544 = vmatprep.subr.mxu0 0.0
  %545 = vmatpush1.msra.mxu0 %v74
  %546 = vmatprep.subr.mxu0 0.0
  %547 = vmatpush1.msra.mxu0 %v75
  %548 = vmatprep.subr.mxu0 0.0
  %549 = vmatpush1.msra.mxu0 %v76
  %550 = vmatprep.subr.mxu0 0.0
  %551 = vmatpush1.msra.mxu0 %v77
  %552 = vmatprep.subr.mxu0 0.0
  %553 = vmatpush1.msra.mxu0 0.0
  %554 = vmatprep.subr.mxu0 0.0
  %555 = vmatpush1.msra.mxu0 0.0
  %556 = vmatprep.subr.mxu0 0.0
  %557 = vmatpush1.msra.mxu0 0.0
  %558 = vmatprep.subr.mxu0 0.0
  %559 = vmatpush1.msra.mxu0 0.0
  %560 = vmatprep.subr.mxu0 0.0
  %561 = vmatpush1.msra.mxu0 0.0
  %562 = vmatprep.subr.mxu0 0.0
  %563 = vmatpush1.msra.mxu0 0.0
  %564 = vmatprep.subr.mxu0 0.0
  %565 = vmatpush1.msra.mxu0 0.0
  %566 = vmatprep.subr.mxu0 0.0
  %567 = vmatpush1.msra.mxu0 0.0
  %568 = vmatprep.subr.mxu0 0.0
  %569 = vmatpush1.msra.mxu0 0.0
  %570 = vmatprep.subr.mxu0 0.0
  %571 = vmatpush1.msra.mxu0 0.0
  %572 = vmatprep.subr.mxu0 0.0
  %573 = vmatpush1.msra.mxu0 0.0
  %574 = vmatprep.subr.mxu0 0.0
  %575 = vmatpush1.msra.mxu0 0.0
  %576 = vmatprep.subr.mxu0 0.0
  %577 = vmatpush1.msra.mxu0 0.0
  %578 = vmatprep.subr.mxu0 0.0
  %579 = vmatpush1.msra.mxu0 0.0
  %580 = vmatprep.subr.mxu0 0.0
  %581 = vmatpush1.msra.mxu0 0.0
  %582 = vmatprep.subr.mxu0 0.0
  %583 = vmatpush1.msra.mxu0 0.0
  %584 = vmatprep.mubr.f32.mxu0 0.0
  %585 = vmatmul.mubr.f32.gmra.mrb[0].mxu0 %v517
  %v586 = vpop.f32.mrb[0].mxu0
  %v587 = vadd.f32 0.0, %v586
  %v588 = vpop.f32.mrb[0].mxu0
  %589 = vmatprep.mubr.f32.mxu0 0.0
  %590 = vmatmul.mubr.f32.gmra.mrb[0].mxu0 %v519
  %v591 = vpop.f32.mrb[0].mxu0
  %v592 = vadd.f32 0.0, %v591
  %v593 = vpop.f32.mrb[0].mxu0
  %594 = vdwg.mxu0
  %v595 = vrcp.pop %v587
  %v596 = vrcp.pop %v592
  %v598 = vsel %vm185, %v595, 0
  %v601 = vsel %vm185, %v596, 0
  %603 = vmatprep.subr.mxu0 0.0
  %604 = vmatpush1.msra.mxu0 %v59
  %605 = vmatprep.subr.mxu0 0.0
  %606 = vmatpush1.msra.mxu0 0.0
  %607 = vmatprep.subr.mxu0 0.0
  %608 = vmatpush1.msra.mxu0 0.0
  %609 = vmatprep.subr.mxu0 0.0
  %610 = vmatpush1.msra.mxu0 0.0
  %611 = vmatprep.subr.mxu0 0.0
  %612 = vmatpush1.msra.mxu0 0.0
  %613 = vmatprep.subr.mxu0 0.0
  %614 = vmatpush1.msra.mxu0 0.0
  %615 = vmatprep.subr.mxu0 0.0
  %616 = vmatpush1.msra.mxu0 0.0
  %617 = vmatprep.subr.mxu0 0.0
  %618 = vmatpush1.msra.mxu0 0.0
  %619 = vmatprep.subr.mxu0 0.0
  %620 = vmatpush1.msra.mxu0 0.0
  %621 = vmatprep.subr.mxu0 0.0
  %622 = vmatpush1.msra.mxu0 0.0
  %623 = vmatprep.subr.mxu0 0.0
  %624 = vmatpush1.msra.mxu0 0.0
  %625 = vmatprep.subr.mxu0 0.0
  %626 = vmatpush1.msra.mxu0 0.0
  %627 = vmatprep.subr.mxu0 0.0
  %628 = vmatpush1.msra.mxu0 0.0
  %629 = vmatprep.subr.mxu0 0.0
  %630 = vmatpush1.msra.mxu0 0.0
  %631 = vmatprep.subr.mxu0 0.0
  %632 = vmatpush1.msra.mxu0 0.0
  %633 = vmatprep.subr.mxu0 0.0
  %634 = vmatpush1.msra.mxu0 0.0
  %635 = vmatprep.subr.mxu0 0.0
  %636 = vmatpush1.msra.mxu0 0.0
  %637 = vmatprep.subr.mxu0 0.0
  %638 = vmatpush1.msra.mxu0 0.0
  %639 = vmatprep.subr.mxu0 0.0
  %640 = vmatpush1.msra.mxu0 0.0
  %641 = vmatprep.subr.mxu0 0.0
  %642 = vmatpush1.msra.mxu0 0.0
  %643 = vmatprep.subr.mxu0 0.0
  %644 = vmatpush1.msra.mxu0 0.0
  %645 = vmatprep.subr.mxu0 0.0
  %646 = vmatpush1.msra.mxu0 0.0
  %647 = vmatprep.subr.mxu0 0.0
  %648 = vmatpush1.msra.mxu0 0.0
  %649 = vmatprep.subr.mxu0 0.0
  %650 = vmatpush1.msra.mxu0 0.0
  %651 = vmatprep.subr.mxu0 0.0
  %652 = vmatpush1.msra.mxu0 0.0
  %653 = vmatprep.subr.mxu0 0.0
  %654 = vmatpush1.msra.mxu0 0.0
  %655 = vmatprep.subr.mxu0 0.0
  %656 = vmatpush1.msra.mxu0 0.0
  %657 = vmatprep.subr.mxu0 0.0
  %658 = vmatpush1.msra.mxu0 0.0
  %659 = vmatprep.subr.mxu0 0.0
  %660 = vmatpush1.msra.mxu0 0.0
  %661 = vmatprep.subr.mxu0 0.0
  %662 = vmatpush1.msra.mxu0 0.0
  %663 = vmatprep.subr.mxu0 0.0
  %664 = vmatpush1.msra.mxu0 0.0
  %665 = vmatprep.subr.mxu0 0.0
  %666 = vmatpush1.msra.mxu0 0.0
  %667 = vmatprep.mubr.f32.mxu0 0.0
  %668 = vmatmul.mubr.f32.gmra.mrb[0].mxu0 %v598
  %v669 = vpop.f32.mrb[0].mxu0
  %v670 = vadd.f32 0.0, %v669
  %v671 = vpop.f32.mrb[0].mxu0
  %672 = vmatprep.mubr.f32.mxu0 0.0
  %673 = vmatmul.mubr.f32.gmra.mrb[0].mxu0 %v601
  %v674 = vpop.f32.mrb[0].mxu0
  %v675 = vadd.f32 0.0, %v674
  %v676 = vpop.f32.mrb[0].mxu0
  %677 = vdwg.mxu0
  %v678 = vmul.f32 %v517, %v670
  %v679 = vmul.f32 %v519, %v675
  %v680 = vpack.c.bf16 %v235, %v231
  %v681 = vpack.c.bf16 %v237, %v233
  %v684 = vcombine.low %v680, %v681
  %v685 = vcombine.high %v680, %v681
  %v687 = vunpack.c.l.s4 1966171168
  %v688 = vunpack.c.0.s8 %v687
  %v689 = vlaneseq
  %v690 = vshrl.u32 %v689, 7
  %v691 = vsub.s32 %v688, %v690
  %v692 = vrot.slane %v684, %v691
  %v694 = vunpack.c.l.s4 1966171168
  %v695 = vunpack.c.0.s8 %v694
  %v696 = vlaneseq
  %v697 = vshrl.u32 %v696, 7
  %v698 = vsub.s32 %v695, %v697
  %v699 = vrot.slane %v685, %v698
  %v700 = vcombine.high %v692, %v692
  %v701 = vcombine.high %v699, %v699
  %v703 = vunpack.c.l.s4 1966171168
  %v704 = vunpack.c.0.s8 %v703
  %v705 = vlaneseq
  %v706 = vshrl.u32 %v705, 7
  %v707 = vsub.s32 %v704, %v706
  %v708 = vrot.slane %v692, %v707
  %v710 = vunpack.c.l.s4 1966171168
  %v711 = vunpack.c.0.s8 %v710
  %v712 = vlaneseq
  %v713 = vshrl.u32 %v712, 7
  %v714 = vsub.s32 %v711, %v713
  %v715 = vrot.slane %v699, %v714
  %v717 = vunpack.c.l.s4 1966171168
  %v718 = vunpack.c.0.s8 %v717
  %v719 = vlaneseq
  %v720 = vshrl.u32 %v719, 7
  %v721 = vsub.s32 %v718, %v720
  %v722 = vrot.slane %v700, %v721
  %v724 = vunpack.c.l.s4 1966171168
  %v725 = vunpack.c.0.s8 %v724
  %v726 = vlaneseq
  %v727 = vshrl.u32 %v726, 7
  %v728 = vsub.s32 %v725, %v727
  %v729 = vrot.slane %v701, %v728
  %v730 = vcombine.high %v708, %v708
  %v731 = vcombine.high %v715, %v715
  %v732 = vcombine.high %v722, %v722
  %v733 = vcombine.high %v729, %v729
  %v734 = vunpack.i.l.s16 %v708
  %v735 = vunpack.i.h.s16 %v708
  %v736 = vunpack.i.l.s16 %v722
  %v737 = vunpack.i.h.s16 %v722
  %v738 = vunpack.i.l.s16 %v730
  %v739 = vunpack.i.h.s16 %v730
  %v740 = vunpack.i.l.s16 %v732
  %v741 = vunpack.i.h.s16 %v732
  %v742 = vunpack.i.l.s16 %v715
  %v743 = vunpack.i.h.s16 %v715
  %v744 = vunpack.i.l.s16 %v729
  %v745 = vunpack.i.h.s16 %v729
  %v746 = vunpack.i.l.s16 %v731
  %v747 = vunpack.i.h.s16 %v731
  %v748 = vunpack.i.l.s16 %v733
  %v749 = vunpack.i.h.s16 %v733
  %v750 = vpack.i.b16 %v734, %v734
  %v751 = vpack.i.b16 %v735, %v735
  %v752 = vpack.i.b16 %v736, %v736
  %v753 = vpack.i.b16 %v737, %v737
  %v754 = vpack.i.b16 %v738, %v738
  %v755 = vpack.i.b16 %v739, %v739
  %v756 = vpack.i.b16 %v740, %v740
  %v757 = vpack.i.b16 %v741, %v741
  %v758 = vpack.i.b16 %v742, %v742
  %v759 = vpack.i.b16 %v743, %v743
  %v760 = vpack.i.b16 %v744, %v744
  %v761 = vpack.i.b16 %v745, %v745
  %v762 = vpack.i.b16 %v746, %v746
  %v763 = vpack.i.b16 %v747, %v747
  %v764 = vpack.i.b16 %v748, %v748
  %v765 = vpack.i.b16 %v749, %v749
  %v766 = vlaneseq
  %v767 = vshrl.u32 %v766, 7
  %v768 = vsub.s32 0, %v767
  %v769 = vrot.slane %v750, %v768
  %v770 = vlaneseq
  %v771 = vshrl.u32 %v770, 7
  %v772 = vsub.s32 1, %v771
  %v773 = vrot.slane %v750, %v772
  %v774 = vlaneseq
  %v775 = vshrl.u32 %v774, 7
  %v776 = vsub.s32 0, %v775
  %v777 = vrot.slane %v751, %v776
  %v778 = vlaneseq
  %v779 = vshrl.u32 %v778, 7
  %v780 = vsub.s32 1, %v779
  %v781 = vrot.slane %v751, %v780
  %v782 = vlaneseq
  %v783 = vshrl.u32 %v782, 7
  %v784 = vsub.s32 0, %v783
  %v785 = vrot.slane %v752, %v784
  %v786 = vlaneseq
  %v787 = vshrl.u32 %v786, 7
  %v788 = vsub.s32 1, %v787
  %v789 = vrot.slane %v752, %v788
  %v790 = vlaneseq
  %v791 = vshrl.u32 %v790, 7
  %v792 = vsub.s32 0, %v791
  %v793 = vrot.slane %v753, %v792
  %v794 = vlaneseq
  %v795 = vshrl.u32 %v794, 7
  %v796 = vsub.s32 1, %v795
  %v797 = vrot.slane %v753, %v796
  %v798 = vlaneseq
  %v799 = vshrl.u32 %v798, 7
  %v800 = vsub.s32 0, %v799
  %v801 = vrot.slane %v754, %v800
  %v802 = vlaneseq
  %v803 = vshrl.u32 %v802, 7
  %v804 = vsub.s32 1, %v803
  %v805 = vrot.slane %v754, %v804
  %v806 = vlaneseq
  %v807 = vshrl.u32 %v806, 7
  %v808 = vsub.s32 0, %v807
  %v809 = vrot.slane %v755, %v808
  %v810 = vlaneseq
  %v811 = vshrl.u32 %v810, 7
  %v812 = vsub.s32 1, %v811
  %v813 = vrot.slane %v755, %v812
  %v814 = vlaneseq
  %v815 = vshrl.u32 %v814, 7
  %v816 = vsub.s32 0, %v815
  %v817 = vrot.slane %v756, %v816
  %v818 = vlaneseq
  %v819 = vshrl.u32 %v818, 7
  %v820 = vsub.s32 1, %v819
  %v821 = vrot.slane %v756, %v820
  %v822 = vlaneseq
  %v823 = vshrl.u32 %v822, 7
  %v824 = vsub.s32 0, %v823
  %v825 = vrot.slane %v757, %v824
  %v826 = vlaneseq
  %v827 = vshrl.u32 %v826, 7
  %v828 = vsub.s32 1, %v827
  %v829 = vrot.slane %v757, %v828
  %v830 = vlaneseq
  %v831 = vshrl.u32 %v830, 7
  %v832 = vsub.s32 0, %v831
  %v833 = vrot.slane %v758, %v832
  %v834 = vlaneseq
  %v835 = vshrl.u32 %v834, 7
  %v836 = vsub.s32 1, %v835
  %v837 = vrot.slane %v758, %v836
  %v838 = vlaneseq
  %v839 = vshrl.u32 %v838, 7
  %v840 = vsub.s32 0, %v839
  %v841 = vrot.slane %v759, %v840
  %v842 = vlaneseq
  %v843 = vshrl.u32 %v842, 7
  %v844 = vsub.s32 1, %v843
  %v845 = vrot.slane %v759, %v844
  %v846 = vlaneseq
  %v847 = vshrl.u32 %v846, 7
  %v848 = vsub.s32 0, %v847
  %v849 = vrot.slane %v760, %v848
  %v850 = vlaneseq
  %v851 = vshrl.u32 %v850, 7
  %v852 = vsub.s32 1, %v851
  %v853 = vrot.slane %v760, %v852
  %v854 = vlaneseq
  %v855 = vshrl.u32 %v854, 7
  %v856 = vsub.s32 0, %v855
  %v857 = vrot.slane %v761, %v856
  %v858 = vlaneseq
  %v859 = vshrl.u32 %v858, 7
  %v860 = vsub.s32 1, %v859
  %v861 = vrot.slane %v761, %v860
  %v862 = vlaneseq
  %v863 = vshrl.u32 %v862, 7
  %v864 = vsub.s32 0, %v863
  %v865 = vrot.slane %v762, %v864
  %v866 = vlaneseq
  %v867 = vshrl.u32 %v866, 7
  %v868 = vsub.s32 1, %v867
  %v869 = vrot.slane %v762, %v868
  %v870 = vlaneseq
  %v871 = vshrl.u32 %v870, 7
  %v872 = vsub.s32 0, %v871
  %v873 = vrot.slane %v763, %v872
  %v874 = vlaneseq
  %v875 = vshrl.u32 %v874, 7
  %v876 = vsub.s32 1, %v875
  %v877 = vrot.slane %v763, %v876
  %v878 = vlaneseq
  %v879 = vshrl.u32 %v878, 7
  %v880 = vsub.s32 0, %v879
  %v881 = vrot.slane %v764, %v880
  %v882 = vlaneseq
  %v883 = vshrl.u32 %v882, 7
  %v884 = vsub.s32 1, %v883
  %v885 = vrot.slane %v764, %v884
  %v886 = vlaneseq
  %v887 = vshrl.u32 %v886, 7
  %v888 = vsub.s32 0, %v887
  %v889 = vrot.slane %v765, %v888
  %v890 = vlaneseq
  %v891 = vshrl.u32 %v890, 7
  %v892 = vsub.s32 1, %v891
  %v893 = vrot.slane %v765, %v892
  %v895 = vpack.i.b16 %v769, %v769
  %v897 = vlaneseq
  %v898 = vshrl.u32 %v897, 7
  %v899 = vsub.s32 0, %v898
  %v900 = vrot.slane %v895, %v899
  %v902 = vpack.i.b16 %v773, %v773
  %v904 = vlaneseq
  %v905 = vshrl.u32 %v904, 7
  %v906 = vsub.s32 0, %v905
  %v907 = vrot.slane %v902, %v906
  %v909 = vpack.i.b16 %v777, %v777
  %v911 = vlaneseq
  %v912 = vshrl.u32 %v911, 7
  %v913 = vsub.s32 0, %v912
  %v914 = vrot.slane %v909, %v913
  %v916 = vpack.i.b16 %v781, %v781
  %v918 = vlaneseq
  %v919 = vshrl.u32 %v918, 7
  %v920 = vsub.s32 0, %v919
  %v921 = vrot.slane %v916, %v920
  %v923 = vpack.i.b16 %v785, %v785
  %v925 = vlaneseq
  %v926 = vshrl.u32 %v925, 7
  %v927 = vsub.s32 0, %v926
  %v928 = vrot.slane %v923, %v927
  %v930 = vpack.i.b16 %v789, %v789
  %v932 = vlaneseq
  %v933 = vshrl.u32 %v932, 7
  %v934 = vsub.s32 0, %v933
  %v935 = vrot.slane %v930, %v934
  %v937 = vpack.i.b16 %v793, %v793
  %v939 = vlaneseq
  %v940 = vshrl.u32 %v939, 7
  %v941 = vsub.s32 0, %v940
  %v942 = vrot.slane %v937, %v941
  %v944 = vpack.i.b16 %v797, %v797
  %v946 = vlaneseq
  %v947 = vshrl.u32 %v946, 7
  %v948 = vsub.s32 0, %v947
  %v949 = vrot.slane %v944, %v948
  %v951 = vpack.i.b16 %v801, %v801
  %v953 = vlaneseq
  %v954 = vshrl.u32 %v953, 7
  %v955 = vsub.s32 0, %v954
  %v956 = vrot.slane %v951, %v955
  %v958 = vpack.i.b16 %v805, %v805
  %v960 = vlaneseq
  %v961 = vshrl.u32 %v960, 7
  %v962 = vsub.s32 0, %v961
  %v963 = vrot.slane %v958, %v962
  %v965 = vpack.i.b16 %v809, %v809
  %v967 = vlaneseq
  %v968 = vshrl.u32 %v967, 7
  %v969 = vsub.s32 0, %v968
  %v970 = vrot.slane %v965, %v969
  %v972 = vpack.i.b16 %v813, %v813
  %v974 = vlaneseq
  %v975 = vshrl.u32 %v974, 7
  %v976 = vsub.s32 0, %v975
  %v977 = vrot.slane %v972, %v976
  %v979 = vpack.i.b16 %v817, %v817
  %v981 = vlaneseq
  %v982 = vshrl.u32 %v981, 7
  %v983 = vsub.s32 0, %v982
  %v984 = vrot.slane %v979, %v983
  %v986 = vpack.i.b16 %v821, %v821
  %v988 = vlaneseq
  %v989 = vshrl.u32 %v988, 7
  %v990 = vsub.s32 0, %v989
  %v991 = vrot.slane %v986, %v990
  %v993 = vpack.i.b16 %v825, %v825
  %v995 = vlaneseq
  %v996 = vshrl.u32 %v995, 7
  %v997 = vsub.s32 0, %v996
  %v998 = vrot.slane %v993, %v997
  %v1000 = vpack.i.b16 %v829, %v829
  %v1002 = vlaneseq
  %v1003 = vshrl.u32 %v1002, 7
  %v1004 = vsub.s32 0, %v1003
  %v1005 = vrot.slane %v1000, %v1004
  %v1007 = vpack.i.b16 %v833, %v833
  %v1009 = vlaneseq
  %v1010 = vshrl.u32 %v1009, 7
  %v1011 = vsub.s32 0, %v1010
  %v1012 = vrot.slane %v1007, %v1011
  %v1014 = vpack.i.b16 %v837, %v837
  %v1016 = vlaneseq
  %v1017 = vshrl.u32 %v1016, 7
  %v1018 = vsub.s32 0, %v1017
  %v1019 = vrot.slane %v1014, %v1018
  %v1021 = vpack.i.b16 %v841, %v841
  %v1023 = vlaneseq
  %v1024 = vshrl.u32 %v1023, 7
  %v1025 = vsub.s32 0, %v1024
  %v1026 = vrot.slane %v1021, %v1025
  %v1028 = vpack.i.b16 %v845, %v845
  %v1030 = vlaneseq
  %v1031 = vshrl.u32 %v1030, 7
  %v1032 = vsub.s32 0, %v1031
  %v1033 = vrot.slane %v1028, %v1032
  %v1035 = vpack.i.b16 %v849, %v849
  %v1037 = vlaneseq
  %v1038 = vshrl.u32 %v1037, 7
  %v1039 = vsub.s32 0, %v1038
  %v1040 = vrot.slane %v1035, %v1039
  %v1042 = vpack.i.b16 %v853, %v853
  %v1044 = vlaneseq
  %v1045 = vshrl.u32 %v1044, 7
  %v1046 = vsub.s32 0, %v1045
  %v1047 = vrot.slane %v1042, %v1046
  %v1049 = vpack.i.b16 %v857, %v857
  %v1051 = vlaneseq
  %v1052 = vshrl.u32 %v1051, 7
  %v1053 = vsub.s32 0, %v1052
  %v1054 = vrot.slane %v1049, %v1053
  %v1056 = vpack.i.b16 %v861, %v861
  %v1058 = vlaneseq
  %v1059 = vshrl.u32 %v1058, 7
  %v1060 = vsub.s32 0, %v1059
  %v1061 = vrot.slane %v1056, %v1060
  %v1063 = vpack.i.b16 %v865, %v865
  %v1065 = vlaneseq
  %v1066 = vshrl.u32 %v1065, 7
  %v1067 = vsub.s32 0, %v1066
  %v1068 = vrot.slane %v1063, %v1067
  %v1070 = vpack.i.b16 %v869, %v869
  %v1072 = vlaneseq
  %v1073 = vshrl.u32 %v1072, 7
  %v1074 = vsub.s32 0, %v1073
  %v1075 = vrot.slane %v1070, %v1074
  %v1077 = vpack.i.b16 %v873, %v873
  %v1079 = vlaneseq
  %v1080 = vshrl.u32 %v1079, 7
  %v1081 = vsub.s32 0, %v1080
  %v1082 = vrot.slane %v1077, %v1081
  %v1084 = vpack.i.b16 %v877, %v877
  %v1086 = vlaneseq
  %v1087 = vshrl.u32 %v1086, 7
  %v1088 = vsub.s32 0, %v1087
  %v1089 = vrot.slane %v1084, %v1088
  %v1091 = vpack.i.b16 %v881, %v881
  %v1093 = vlaneseq
  %v1094 = vshrl.u32 %v1093, 7
  %v1095 = vsub.s32 0, %v1094
  %v1096 = vrot.slane %v1091, %v1095
  %v1098 = vpack.i.b16 %v885, %v885
  %v1100 = vlaneseq
  %v1101 = vshrl.u32 %v1100, 7
  %v1102 = vsub.s32 0, %v1101
  %v1103 = vrot.slane %v1098, %v1102
  %v1105 = vpack.i.b16 %v889, %v889
  %v1107 = vlaneseq
  %v1108 = vshrl.u32 %v1107, 7
  %v1109 = vsub.s32 0, %v1108
  %v1110 = vrot.slane %v1105, %v1109
  %v1112 = vpack.i.b16 %v893, %v893
  %v1114 = vlaneseq
  %v1115 = vshrl.u32 %v1114, 7
  %v1116 = vsub.s32 0, %v1115
  %v1117 = vrot.slane %v1112, %v1116
  %v1150 = vunpack.c.l.b16 %v900
  %v1151 = vunpack.c.l.b16 %v907
  %v1152 = vunpack.c.l.b16 %v914
  %v1153 = vunpack.c.l.b16 %v921
  %v1154 = vunpack.c.l.b16 %v928
  %v1155 = vunpack.c.l.b16 %v935
  %v1156 = vunpack.c.l.b16 %v942
  %v1157 = vunpack.c.l.b16 %v949
  %v1158 = vunpack.c.l.b16 %v956
  %v1159 = vunpack.c.l.b16 %v963
  %v1160 = vunpack.c.l.b16 %v970
  %v1161 = vunpack.c.l.b16 %v977
  %v1162 = vunpack.c.l.b16 %v984
  %v1163 = vunpack.c.l.b16 %v991
  %v1164 = vunpack.c.l.b16 %v998
  %v1165 = vunpack.c.l.b16 %v1005
  %v1166 = vunpack.c.l.b16 %v1012
  %v1167 = vunpack.c.l.b16 %v1019
  %v1168 = vunpack.c.l.b16 %v1026
  %v1169 = vunpack.c.l.b16 %v1033
  %v1170 = vunpack.c.l.b16 %v1040
  %v1171 = vunpack.c.l.b16 %v1047
  %v1172 = vunpack.c.l.b16 %v1054
  %v1173 = vunpack.c.l.b16 %v1061
  %v1174 = vunpack.c.l.b16 %v1068
  %v1175 = vunpack.c.l.b16 %v1075
  %v1176 = vunpack.c.l.b16 %v1082
  %v1177 = vunpack.c.l.b16 %v1089
  %v1178 = vunpack.c.l.b16 %v1096
  %v1179 = vunpack.c.l.b16 %v1103
  %v1180 = vunpack.c.l.b16 %v1110
  %v1181 = vunpack.c.l.b16 %v1117
  %v1182 = vpack.c.b16 %v1151, %v1150
  %v1183 = vpack.c.b16 %v1153, %v1152
  %v1184 = vpack.c.b16 %v1155, %v1154
  %v1185 = vpack.c.b16 %v1157, %v1156
  %v1186 = vpack.c.b16 %v1159, %v1158
  %v1187 = vpack.c.b16 %v1161, %v1160
  %v1188 = vpack.c.b16 %v1163, %v1162
  %v1189 = vpack.c.b16 %v1165, %v1164
  %v1190 = vpack.c.b16 %v1167, %v1166
  %v1191 = vpack.c.b16 %v1169, %v1168
  %v1192 = vpack.c.b16 %v1171, %v1170
  %v1193 = vpack.c.b16 %v1173, %v1172
  %v1194 = vpack.c.b16 %v1175, %v1174
  %v1195 = vpack.c.b16 %v1177, %v1176
  %v1196 = vpack.c.b16 %v1179, %v1178
  %v1197 = vpack.c.b16 %v1181, %v1180
  %v1214 = vld [vmem:[%s9] sm:$0xff]
  %v1215 = vld [vmem:[%s9 + $0x8] sm:$0xff]
  %v1216 = vld [vmem:[%s9 + $0x10] sm:$0xff]
  %v1217 = vld [vmem:[%s9 + $0x18] sm:$0xff]
  %v1218 = vld [vmem:[%s9 + $0x20] sm:$0xff]
  %v1219 = vld [vmem:[%s9 + $0x28] sm:$0xff]
  %v1220 = vld [vmem:[%s9 + $0x30] sm:$0xff]
  %v1221 = vld [vmem:[%s9 + $0x38] sm:$0xff]
  %v1222 = vld [vmem:[%s9 + $0x40] sm:$0xff]
  %v1223 = vld [vmem:[%s9 + $0x48] sm:$0xff]
  %v1224 = vld [vmem:[%s9 + $0x50] sm:$0xff]
  %v1225 = vld [vmem:[%s9 + $0x58] sm:$0xff]
  %v1226 = vld [vmem:[%s9 + $0x60] sm:$0xff]
  %v1227 = vld [vmem:[%s9 + $0x68] sm:$0xff]
  %v1228 = vld [vmem:[%s9 + $0x70] sm:$0xff]
  %v1229 = vld [vmem:[%s9 + $0x78] sm:$0xff]
  %v1230 = vmul.bf16 %v1182, %v1214
  %v1231 = vmul.bf16 %v1183, %v1215
  %v1232 = vmul.bf16 %v1184, %v1216
  %v1233 = vmul.bf16 %v1185, %v1217
  %v1234 = vmul.bf16 %v1186, %v1218
  %v1235 = vmul.bf16 %v1187, %v1219
  %v1236 = vmul.bf16 %v1188, %v1220
  %v1237 = vmul.bf16 %v1189, %v1221
  %v1238 = vmul.bf16 %v1190, %v1222
  %v1239 = vmul.bf16 %v1191, %v1223
  %v1240 = vmul.bf16 %v1192, %v1224
  %v1241 = vmul.bf16 %v1193, %v1225
  %v1242 = vmul.bf16 %v1194, %v1226
  %v1243 = vmul.bf16 %v1195, %v1227
  %v1244 = vmul.bf16 %v1196, %v1228
  %v1245 = vmul.bf16 %v1197, %v1229
  %v1246 = vpack.c.bf16 %v679, %v678
  %v1263 = vunpack.c.l.b16 %v1230
  %v1264 = vunpack.c.h.b16 %v1230
  %v1265 = vunpack.c.l.b16 %v1231
  %v1266 = vunpack.c.h.b16 %v1231
  %v1267 = vunpack.c.l.b16 %v1232
  %v1268 = vunpack.c.h.b16 %v1232
  %v1269 = vunpack.c.l.b16 %v1233
  %v1270 = vunpack.c.h.b16 %v1233
  %v1271 = vunpack.c.l.b16 %v1234
  %v1272 = vunpack.c.h.b16 %v1234
  %v1273 = vunpack.c.l.b16 %v1235
  %v1274 = vunpack.c.h.b16 %v1235
  %v1275 = vunpack.c.l.b16 %v1236
  %v1276 = vunpack.c.h.b16 %v1236
  %v1277 = vunpack.c.l.b16 %v1237
  %v1278 = vunpack.c.h.b16 %v1237
  %v1279 = vunpack.c.l.b16 %v1238
  %v1280 = vunpack.c.h.b16 %v1238
  %v1281 = vunpack.c.l.b16 %v1239
  %v1282 = vunpack.c.h.b16 %v1239
  %v1283 = vunpack.c.l.b16 %v1240
  %v1284 = vunpack.c.h.b16 %v1240
  %v1285 = vunpack.c.l.b16 %v1241
  %v1286 = vunpack.c.h.b16 %v1241
  %v1287 = vunpack.c.l.b16 %v1242
  %v1288 = vunpack.c.h.b16 %v1242
  %v1289 = vunpack.c.l.b16 %v1243
  %v1290 = vunpack.c.h.b16 %v1243
  %v1291 = vunpack.c.l.b16 %v1244
  %v1292 = vunpack.c.h.b16 %v1244
  %v1293 = vunpack.c.l.b16 %v1245
  %v1294 = vunpack.c.h.b16 %v1245
  %v1295 = vpack.c.b16 %v1265, %v1263
  %v1296 = vpack.c.b16 %v1266, %v1264
  %v1297 = vpack.c.b16 %v1269, %v1267
  %v1298 = vpack.c.b16 %v1270, %v1268
  %v1299 = vpack.c.b16 %v1273, %v1271
  %v1300 = vpack.c.b16 %v1274, %v1272
  %v1301 = vpack.c.b16 %v1277, %v1275
  %v1302 = vpack.c.b16 %v1278, %v1276
  %v1303 = vpack.c.b16 %v1281, %v1279
  %v1304 = vpack.c.b16 %v1282, %v1280
  %v1305 = vpack.c.b16 %v1285, %v1283
  %v1306 = vpack.c.b16 %v1286, %v1284
  %v1307 = vpack.c.b16 %v1289, %v1287
  %v1308 = vpack.c.b16 %v1290, %v1288
  %v1309 = vpack.c.b16 %v1293, %v1291
  %v1310 = vpack.c.b16 %v1294, %v1292
  %1327 = vmatprep.subr.bf16.mxu0 %v1296
  %1328 = vmatpush1.bf16.msra.mxu0 %v1295
  %1329 = vmatprep.subr.bf16.mxu0 %v1298
  %1330 = vmatpush1.bf16.msra.mxu0 %v1297
  %1331 = vmatprep.subr.bf16.mxu0 %v1300
  %1332 = vmatpush1.bf16.msra.mxu0 %v1299
  %1333 = vmatprep.subr.bf16.mxu0 %v1302
  %1334 = vmatpush1.bf16.msra.mxu0 %v1301
  %1335 = vmatprep.subr.bf16.mxu0 %v1304
  %1336 = vmatpush1.bf16.msra.mxu0 %v1303
  %1337 = vmatprep.subr.bf16.mxu0 %v1306
  %1338 = vmatpush1.bf16.msra.mxu0 %v1305
  %1339 = vmatprep.subr.bf16.mxu0 %v1308
  %1340 = vmatpush1.bf16.msra.mxu0 %v1307
  %1341 = vmatprep.subr.bf16.mxu0 %v1310
  %1342 = vmatpush1.bf16.msra.mxu0 %v1309
  %1343 = vmatprep.subr.bf16.mxu0 0
  %1344 = vmatpush1.bf16.msra.mxu0 0
  %1345 = vmatprep.subr.bf16.mxu0 0
  %1346 = vmatpush1.bf16.msra.mxu0 0
  %1347 = vmatprep.subr.bf16.mxu0 0
  %1348 = vmatpush1.bf16.msra.mxu0 0
  %1349 = vmatprep.subr.bf16.mxu0 0
  %1350 = vmatpush1.bf16.msra.mxu0 0
  %1351 = vmatprep.subr.bf16.mxu0 0
  %1352 = vmatpush1.bf16.msra.mxu0 0
  %1353 = vmatprep.subr.bf16.mxu0 0
  %1354 = vmatpush1.bf16.msra.mxu0 0
  %1355 = vmatprep.subr.bf16.mxu0 0
  %1356 = vmatpush1.bf16.msra.mxu0 0
  %1357 = vmatprep.subr.bf16.mxu0 0
  %1358 = vmatpush1.bf16.msra.mxu0 0
  %1359 = vmatprep.mubr.bf16.mxu0 0
  %1360 = vmatmul.mubr.bf16.gmra.mrb[0].mxu0 %v1246
  %v1361 = vpop.f32.mrb[0].mxu0
  %v1362 = vadd.f32 0.0, %v1361
  %v1363 = vpop.f32.mrb[0].mxu0
  %v1364 = vadd.f32 0.0, %v1363
  %v1365 = vpop.f32.mrb[0].mxu0
  %v1366 = vadd.f32 0.0, %v1365
  %v1367 = vpop.f32.mrb[0].mxu0
  %v1368 = vadd.f32 0.0, %v1367
  %1369 = vdwg.mxu0
  %v1370 = vld [vmem:[%s10] sm:$0xff]
  %v1371 = vld [vmem:[%s10 + $0x8] sm:$0xff]
  %v1372 = vld [vmem:[%s10 + $0x10] sm:$0xff]
  %v1373 = vld [vmem:[%s10 + $0x18] sm:$0xff]
  %v1374 = vld [vmem:[%s10 + $0x20] sm:$0xff]
  %v1375 = vld [vmem:[%s10 + $0x28] sm:$0xff]
  %v1376 = vld [vmem:[%s10 + $0x30] sm:$0xff]
  %v1377 = vld [vmem:[%s10 + $0x38] sm:$0xff]
  %v1378 = vld [vmem:[%s10 + $0x40] sm:$0xff]
  %v1379 = vld [vmem:[%s10 + $0x48] sm:$0xff]
  %v1380 = vld [vmem:[%s10 + $0x50] sm:$0xff]
  %v1381 = vld [vmem:[%s10 + $0x58] sm:$0xff]
  %v1382 = vld [vmem:[%s10 + $0x60] sm:$0xff]
  %v1383 = vld [vmem:[%s10 + $0x68] sm:$0xff]
  %v1384 = vld [vmem:[%s10 + $0x70] sm:$0xff]
  %v1385 = vld [vmem:[%s10 + $0x78] sm:$0xff]
  %v1386 = vld [vmem:[%s10 + $0x80] sm:$0xff]
  %v1387 = vld [vmem:[%s10 + $0x88] sm:$0xff]
  %v1388 = vld [vmem:[%s10 + $0x90] sm:$0xff]
  %v1389 = vld [vmem:[%s10 + $0x98] sm:$0xff]
  %v1390 = vld [vmem:[%s10 + $0xa0] sm:$0xff]
  %v1391 = vld [vmem:[%s10 + $0xa8] sm:$0xff]
  %v1392 = vld [vmem:[%s10 + $0xb0] sm:$0xff]
  %v1393 = vld [vmem:[%s10 + $0xb8] sm:$0xff]
  %v1394 = vld [vmem:[%s10 + $0xc0] sm:$0xff]
  %v1395 = vld [vmem:[%s10 + $0xc8] sm:$0xff]
  %v1396 = vld [vmem:[%s10 + $0xd0] sm:$0xff]
  %v1397 = vld [vmem:[%s10 + $0xd8] sm:$0xff]
  %v1398 = vld [vmem:[%s10 + $0xe0] sm:$0xff]
  %v1399 = vld [vmem:[%s10 + $0xe8] sm:$0xff]
  %v1400 = vld [vmem:[%s10 + $0xf0] sm:$0xff]
  %v1401 = vld [vmem:[%s10 + $0xf8] sm:$0xff]
  %v1402 = vld [vmem:[%s8] sm:$0x1]
  %v1404 = vlaneseq
  %v1405 = vshrl.u32 %v1404, 7
  %v1406 = vsub.s32 0, %v1405
  %v1407 = vrot.slane %v1402, %v1406
  %1409 = vmatprep.subr.mxu0 0.0
  %1410 = vmatpush1.msra.mxu0 %v1370
  %1411 = vmatprep.subr.mxu0 0.0
  %1412 = vmatpush1.msra.mxu0 %v1371
  %1413 = vmatprep.subr.mxu0 0.0
  %1414 = vmatpush1.msra.mxu0 %v1372
  %1415 = vmatprep.subr.mxu0 0.0
  %1416 = vmatpush1.msra.mxu0 %v1373
  %1417 = vmatprep.subr.mxu0 0.0
  %1418 = vmatpush1.msra.mxu0 %v1374
  %1419 = vmatprep.subr.mxu0 0.0
  %1420 = vmatpush1.msra.mxu0 %v1375
  %1421 = vmatprep.subr.mxu0 0.0
  %1422 = vmatpush1.msra.mxu0 %v1376
  %1423 = vmatprep.subr.mxu0 0.0
  %1424 = vmatpush1.msra.mxu0 %v1377
  %1425 = vmatprep.subr.mxu0 0.0
  %1426 = vmatpush1.msra.mxu0 %v1378
  %1427 = vmatprep.subr.mxu0 0.0
  %1428 = vmatpush1.msra.mxu0 %v1379
  %1429 = vmatprep.subr.mxu0 0.0
  %1430 = vmatpush1.msra.mxu0 %v1380
  %1431 = vmatprep.subr.mxu0 0.0
  %1432 = vmatpush1.msra.mxu0 %v1381
  %1433 = vmatprep.subr.mxu0 0.0
  %1434 = vmatpush1.msra.mxu0 %v1382
  %1435 = vmatprep.subr.mxu0 0.0
  %1436 = vmatpush1.msra.mxu0 %v1383
  %1437 = vmatprep.subr.mxu0 0.0
  %1438 = vmatpush1.msra.mxu0 %v1384
  %1439 = vmatprep.subr.mxu0 0.0
  %1440 = vmatpush1.msra.mxu0 %v1385
  %1441 = vmatprep.subr.mxu0 0.0
  %1442 = vmatpush1.msra.mxu0 %v1386
  %1443 = vmatprep.subr.mxu0 0.0
  %1444 = vmatpush1.msra.mxu0 %v1387
  %1445 = vmatprep.subr.mxu0 0.0
  %1446 = vmatpush1.msra.mxu0 %v1388
  %1447 = vmatprep.subr.mxu0 0.0
  %1448 = vmatpush1.msra.mxu0 %v1389
  %1449 = vmatprep.subr.mxu0 0.0
  %1450 = vmatpush1.msra.mxu0 %v1390
  %1451 = vmatprep.subr.mxu0 0.0
  %1452 = vmatpush1.msra.mxu0 %v1391
  %1453 = vmatprep.subr.mxu0 0.0
  %1454 = vmatpush1.msra.mxu0 %v1392
  %1455 = vmatprep.subr.mxu0 0.0
  %1456 = vmatpush1.msra.mxu0 %v1393
  %1457 = vmatprep.subr.mxu0 0.0
  %1458 = vmatpush1.msra.mxu0 %v1394
  %1459 = vmatprep.subr.mxu0 0.0
  %1460 = vmatpush1.msra.mxu0 %v1395
  %1461 = vmatprep.subr.mxu0 0.0
  %1462 = vmatpush1.msra.mxu0 %v1396
  %1463 = vmatprep.subr.mxu0 0.0
  %1464 = vmatpush1.msra.mxu0 %v1397
  %1465 = vmatprep.subr.mxu0 0.0
  %1466 = vmatpush1.msra.mxu0 %v1398
  %1467 = vmatprep.subr.mxu0 0.0
  %1468 = vmatpush1.msra.mxu0 %v1399
  %1469 = vmatprep.subr.mxu0 0.0
  %1470 = vmatpush1.msra.mxu0 %v1400
  %1471 = vmatprep.subr.mxu0 0.0
  %1472 = vmatpush1.msra.mxu0 %v1401
  %1473 = vmatprep.mubr.f32.mxu0 %v1364
  %1474 = vmatmul.mubr.f32.gmra.mrb[0].mxu0 %v1362
  %v1475 = vpop.f32.mrb[0].mxu0
  %v1476 = vadd.f32 %v1407, %v1475
  %v1477 = vpop.f32.mrb[0].mxu0
  %1478 = vmatprep.mubr.f32.mxu0 %v1368
  %1479 = vmatmul.mubr.f32.gmra.mrb[0].mxu0 %v1366
  %v1480 = vpop.f32.mrb[0].mxu0
  %v1481 = vadd.f32 %v1407, %v1480
  %v1482 = vpop.f32.mrb[0].mxu0
  %1483 = vdwg.mxu0
  %v1484 = vmax.f32 %v1476, 0.0
  %v1485 = vmax.f32 %v1481, 0.0
  %v1486 = vpack.c.bf16 %v1485, %v1484
  %v1487 = vld [vmem:[%s11] sm:$0xff]
  %v1488 = vld [vmem:[%s11 + $0x8] sm:$0xff]
  %v1489 = vld [vmem:[%s11 + $0x10] sm:$0xff]
  %v1490 = vld [vmem:[%s11 + $0x18] sm:$0xff]
  %v1491 = vpack.c.bf16 %v1488, %v1487
  %v1492 = vpack.c.bf16 %v1490, %v1489
  %vm1493 = vcmask 261120
  %v1495 = vsel %vm1493, %v1486, 0
  %1497 = vmatprep.subr.bf16.mxu0 0
  %1498 = vmatpush1.bf16.msra.mxu0 %v1491
  %1499 = vmatprep.subr.bf16.mxu0 0
  %1500 = vmatpush1.bf16.msra.mxu0 %v1492
  %1501 = vmatprep.subr.bf16.mxu0 0
  %1502 = vmatpush1.bf16.msra.mxu0 0
  %1503 = vmatprep.subr.bf16.mxu0 0
  %1504 = vmatpush1.bf16.msra.mxu0 0
  %1505 = vmatprep.subr.bf16.mxu0 0
  %1506 = vmatpush1.bf16.msra.mxu0 0
  %1507 = vmatprep.subr.bf16.mxu0 0
  %1508 = vmatpush1.bf16.msra.mxu0 0
  %1509 = vmatprep.subr.bf16.mxu0 0
  %1510 = vmatpush1.bf16.msra.mxu0 0
  %1511 = vmatprep.subr.bf16.mxu0 0
  %1512 = vmatpush1.bf16.msra.mxu0 0
  %1513 = vmatprep.subr.bf16.mxu0 0
  %1514 = vmatpush1.bf16.msra.mxu0 0
  %1515 = vmatprep.subr.bf16.mxu0 0
  %1516 = vmatpush1.bf16.msra.mxu0 0
  %1517 = vmatprep.subr.bf16.mxu0 0
  %1518 = vmatpush1.bf16.msra.mxu0 0
  %1519 = vmatprep.subr.bf16.mxu0 0
  %1520 = vmatpush1.bf16.msra.mxu0 0
  %1521 = vmatprep.subr.bf16.mxu0 0
  %1522 = vmatpush1.bf16.msra.mxu0 0
  %1523 = vmatprep.subr.bf16.mxu0 0
  %1524 = vmatpush1.bf16.msra.mxu0 0
  %1525 = vmatprep.subr.bf16.mxu0 0
  %1526 = vmatpush1.bf16.msra.mxu0 0
  %1527 = vmatprep.subr.bf16.mxu0 0
  %1528 = vmatpush1.bf16.msra.mxu0 0
  %1529 = vmatprep.mubr.bf16.mxu0 0
  %1530 = vmatmul.mubr.bf16.gmra.mrb[0].mxu0 %v1495
  %v1531 = vpop.f32.mrb[0].mxu0
  %v1532 = vadd.f32 0.0, %v1531
  %v1533 = vpop.f32.mrb[0].mxu0
  %v1534 = vpop.f32.mrb[0].mxu0
  %v1535 = vadd.f32 0.0, %v1534
  %v1536 = vpop.f32.mrb[0].mxu0
  %1537 = vdwg.mxu0
  %v1538 = vld [vmem:[%s12] sm:$0xff]
  %v1539 = vld [vmem:[%s12 + $0x8] sm:$0xff]
  %v1540 = vld [vmem:[%s12 + $0x10] sm:$0xff]
  %v1541 = vld [vmem:[%s12 + $0x18] sm:$0xff]
  %v1542 = vpack.c.bf16 %v1539, %v1538
  %v1543 = vpack.c.bf16 %v1541, %v1540
  %1544 = vmatprep.subr.bf16.mxu0 0
  %1545 = vmatpush1.bf16.msra.mxu0 %v1542
  %1546 = vmatprep.subr.bf16.mxu0 0
  %1547 = vmatpush1.bf16.msra.mxu0 %v1543
  %1548 = vmatprep.subr.bf16.mxu0 0
  %1549 = vmatpush1.bf16.msra.mxu0 0
  %1550 = vmatprep.subr.bf16.mxu0 0
  %1551 = vmatpush1.bf16.msra.mxu0 0
  %1552 = vmatprep.subr.bf16.mxu0 0
  %1553 = vmatpush1.bf16.msra.mxu0 0
  %1554 = vmatprep.subr.bf16.mxu0 0
  %1555 = vmatpush1.bf16.msra.mxu0 0
  %1556 = vmatprep.subr.bf16.mxu0 0
  %1557 = vmatpush1.bf16.msra.mxu0 0
  %1558 = vmatprep.subr.bf16.mxu0 0
  %1559 = vmatpush1.bf16.msra.mxu0 0
  %1560 = vmatprep.subr.bf16.mxu0 0
  %1561 = vmatpush1.bf16.msra.mxu0 0
  %1562 = vmatprep.subr.bf16.mxu0 0
  %1563 = vmatpush1.bf16.msra.mxu0 0
  %1564 = vmatprep.subr.bf16.mxu0 0
  %1565 = vmatpush1.bf16.msra.mxu0 0
  %1566 = vmatprep.subr.bf16.mxu0 0
  %1567 = vmatpush1.bf16.msra.mxu0 0
  %1568 = vmatprep.subr.bf16.mxu0 0
  %1569 = vmatpush1.bf16.msra.mxu0 0
  %1570 = vmatprep.subr.bf16.mxu0 0
  %1571 = vmatpush1.bf16.msra.mxu0 0
  %1572 = vmatprep.subr.bf16.mxu0 0
  %1573 = vmatpush1.bf16.msra.mxu0 0
  %1574 = vmatprep.subr.bf16.mxu0 0
  %1575 = vmatpush1.bf16.msra.mxu0 0
  %1576 = vmatprep.mubr.bf16.mxu0 0
  %1577 = vmatmul.mubr.bf16.gmra.mrb[0].mxu0 %v1495
  %v1578 = vpop.f32.mrb[0].mxu0
  %v1579 = vadd.f32 0.0, %v1578
  %v1580 = vpop.f32.mrb[0].mxu0
  %v1581 = vpop.f32.mrb[0].mxu0
  %v1582 = vadd.f32 0.0, %v1581
  %v1583 = vpop.f32.mrb[0].mxu0
  %1584 = vdwg.mxu0
  %v1585 = vld [vmem:[%s13] sm:$0xff]
  %v1586 = vld [vmem:[%s13 + $0x8] sm:$0xff]
  %v1587 = vld [vmem:[%s13 + $0x10] sm:$0xff]
  %v1588 = vld [vmem:[%s13 + $0x18] sm:$0xff]
  %v1589 = vpack.c.bf16 %v1586, %v1585
  %v1590 = vpack.c.bf16 %v1588, %v1587
  %1591 = vmatprep.subr.bf16.mxu0 0
  %1592 = vmatpush1.bf16.msra.mxu0 %v1589
  %1593 = vmatprep.subr.bf16.mxu0 0
  %1594 = vmatpush1.bf16.msra.mxu0 %v1590
  %1595 = vmatprep.subr.bf16.mxu0 0
  %1596 = vmatpush1.bf16.msra.mxu0 0
  %1597 = vmatprep.subr.bf16.mxu0 0
  %1598 = vmatpush1.bf16.msra.mxu0 0
  %1599 = vmatprep.subr.bf16.mxu0 0
  %1600 = vmatpush1.bf16.msra.mxu0 0
  %1601 = vmatprep.subr.bf16.mxu0 0
  %1602 = vmatpush1.bf16.msra.mxu0 0
  %1603 = vmatprep.subr.bf16.mxu0 0
  %1604 = vmatpush1.bf16.msra.mxu0 0
  %1605 = vmatprep.subr.bf16.mxu0 0
  %1606 = vmatpush1.bf16.msra.mxu0 0
  %1607 = vmatprep.subr.bf16.mxu0 0
  %1608 = vmatpush1.bf16.msra.mxu0 0
  %1609 = vmatprep.subr.bf16.mxu0 0
  %1610 = vmatpush1.bf16.msra.mxu0 0
  %1611 = vmatprep.subr.bf16.mxu0 0
  %1612 = vmatpush1.bf16.msra.mxu0 0
  %1613 = vmatprep.subr.bf16.mxu0 0
  %1614 = vmatpush1.bf16.msra.mxu0 0
  %1615 = vmatprep.subr.bf16.mxu0 0
  %1616 = vmatpush1.bf16.msra.mxu0 0
  %1617 = vmatprep.subr.bf16.mxu0 0
  %1618 = vmatpush1.bf16.msra.mxu0 0
  %1619 = vmatprep.subr.bf16.mxu0 0
  %1620 = vmatpush1.bf16.msra.mxu0 0
  %1621 = vmatprep.subr.bf16.mxu0 0
  %1622 = vmatpush1.bf16.msra.mxu0 0
  %1623 = vmatprep.mubr.bf16.mxu0 0
  %1624 = vmatmul.mubr.bf16.gmra.mrb[0].mxu0 %v1495
  %v1625 = vpop.f32.mrb[0].mxu0
  %v1626 = vadd.f32 0.0, %v1625
  %v1627 = vpop.f32.mrb[0].mxu0
  %v1628 = vpop.f32.mrb[0].mxu0
  %v1629 = vadd.f32 0.0, %v1628
  %v1630 = vpop.f32.mrb[0].mxu0
  %1631 = vdwg.mxu0
  %v1633 = vsel %vm185, %v1626, 0
  %v1636 = vsel %vm185, %v1629, 0
  %1638 = vmatprep.subr.mxu0 0.0
  %1639 = vmatpush1.msra.mxu0 %v59
  %1640 = vmatprep.subr.mxu0 0.0
  %1641 = vmatpush1.msra.mxu0 0.0
  %1642 = vmatprep.subr.mxu0 0.0
  %1643 = vmatpush1.msra.mxu0 0.0
  %1644 = vmatprep.subr.mxu0 0.0
  %1645 = vmatpush1.msra.mxu0 0.0
  %1646 = vmatprep.subr.mxu0 0.0
  %1647 = vmatpush1.msra.mxu0 0.0
  %1648 = vmatprep.subr.mxu0 0.0
  %1649 = vmatpush1.msra.mxu0 0.0
  %1650 = vmatprep.subr.mxu0 0.0
  %1651 = vmatpush1.msra.mxu0 0.0
  %1652 = vmatprep.subr.mxu0 0.0
  %1653 = vmatpush1.msra.mxu0 0.0
  %1654 = vmatprep.subr.mxu0 0.0
  %1655 = vmatpush1.msra.mxu0 0.0
  %1656 = vmatprep.subr.mxu0 0.0
  %1657 = vmatpush1.msra.mxu0 0.0
  %1658 = vmatprep.subr.mxu0 0.0
  %1659 = vmatpush1.msra.mxu0 0.0
  %1660 = vmatprep.subr.mxu0 0.0
  %1661 = vmatpush1.msra.mxu0 0.0
  %1662 = vmatprep.subr.mxu0 0.0
  %1663 = vmatpush1.msra.mxu0 0.0
  %1664 = vmatprep.subr.mxu0 0.0
  %1665 = vmatpush1.msra.mxu0 0.0
  %1666 = vmatprep.subr.mxu0 0.0
  %1667 = vmatpush1.msra.mxu0 0.0
  %1668 = vmatprep.subr.mxu0 0.0
  %1669 = vmatpush1.msra.mxu0 0.0
  %1670 = vmatprep.subr.mxu0 0.0
  %1671 = vmatpush1.msra.mxu0 0.0
  %1672 = vmatprep.subr.mxu0 0.0
  %1673 = vmatpush1.msra.mxu0 0.0
  %1674 = vmatprep.subr.mxu0 0.0
  %1675 = vmatpush1.msra.mxu0 0.0
  %1676 = vmatprep.subr.mxu0 0.0
  %1677 = vmatpush1.msra.mxu0 0.0
  %1678 = vmatprep.subr.mxu0 0.0
  %1679 = vmatpush1.msra.mxu0 0.0
  %1680 = vmatprep.subr.mxu0 0.0
  %1681 = vmatpush1.msra.mxu0 0.0
  %1682 = vmatprep.subr.mxu0 0.0
  %1683 = vmatpush1.msra.mxu0 0.0
  %1684 = vmatprep.subr.mxu0 0.0
  %1685 = vmatpush1.msra.mxu0 0.0
  %1686 = vmatprep.subr.mxu0 0.0
  %1687 = vmatpush1.msra.mxu0 0.0
  %1688 = vmatprep.subr.mxu0 0.0
  %1689 = vmatpush1.msra.mxu0 0.0
  %1690 = vmatprep.subr.mxu0 0.0
  %1691 = vmatpush1.msra.mxu0 0.0
  %1692 = vmatprep.subr.mxu0 0.0
  %1693 = vmatpush1.msra.mxu0 0.0
  %1694 = vmatprep.subr.mxu0 0.0
  %1695 = vmatpush1.msra.mxu0 0.0
  %1696 = vmatprep.subr.mxu0 0.0
  %1697 = vmatpush1.msra.mxu0 0.0
  %1698 = vmatprep.subr.mxu0 0.0
  %1699 = vmatpush1.msra.mxu0 0.0
  %1700 = vmatprep.subr.mxu0 0.0
  %1701 = vmatpush1.msra.mxu0 0.0
  %1702 = vmatprep.mubr.f32.mxu0 0.0
  %1703 = vmatmul.mubr.f32.gmra.mrb[0].mxu0 %v1633
  %v1704 = vpop.f32.mrb[0].mxu0
  %v1705 = vadd.f32 0.0, %v1704
  %v1706 = vpop.f32.mrb[0].mxu0
  %1707 = vmatprep.mubr.f32.mxu0 0.0
  %1708 = vmatmul.mubr.f32.gmra.mrb[0].mxu0 %v1636
  %v1709 = vpop.f32.mrb[0].mxu0
  %v1710 = vadd.f32 0.0, %v1709
  %v1711 = vpop.f32.mrb[0].mxu0
  %1712 = vdwg.mxu0
  %v1713 = vmul.f32 %v60, %v1705
  %v1714 = vmul.f32 %v61, %v1710
  %v1715 = vadd.f32 %v1713, %v1714
  %v1716 = vrot.slane %v1715, 4
  %v1717 = vadd.f32 %v1715, %v1716
  %v1718 = vrot.slane %v1717, 2
  %v1719 = vadd.f32 %v1717, %v1718
  %v1720 = vrot.slane %v1719, 1
  %v1721 = vadd.f32 %v1719, %v1720
  %v1723 = vsel %vm185, %v1579, 0
  %v1726 = vsel %vm185, %v1582, 0
  %1728 = vmatprep.subr.mxu0 0.0
  %1729 = vmatpush1.msra.mxu0 %v59
  %1730 = vmatprep.subr.mxu0 0.0
  %1731 = vmatpush1.msra.mxu0 0.0
  %1732 = vmatprep.subr.mxu0 0.0
  %1733 = vmatpush1.msra.mxu0 0.0
  %1734 = vmatprep.subr.mxu0 0.0
  %1735 = vmatpush1.msra.mxu0 0.0
  %1736 = vmatprep.subr.mxu0 0.0
  %1737 = vmatpush1.msra.mxu0 0.0
  %1738 = vmatprep.subr.mxu0 0.0
  %1739 = vmatpush1.msra.mxu0 0.0
  %1740 = vmatprep.subr.mxu0 0.0
  %1741 = vmatpush1.msra.mxu0 0.0
  %1742 = vmatprep.subr.mxu0 0.0
  %1743 = vmatpush1.msra.mxu0 0.0
  %1744 = vmatprep.subr.mxu0 0.0
  %1745 = vmatpush1.msra.mxu0 0.0
  %1746 = vmatprep.subr.mxu0 0.0
  %1747 = vmatpush1.msra.mxu0 0.0
  %1748 = vmatprep.subr.mxu0 0.0
  %1749 = vmatpush1.msra.mxu0 0.0
  %1750 = vmatprep.subr.mxu0 0.0
  %1751 = vmatpush1.msra.mxu0 0.0
  %1752 = vmatprep.subr.mxu0 0.0
  %1753 = vmatpush1.msra.mxu0 0.0
  %1754 = vmatprep.subr.mxu0 0.0
  %1755 = vmatpush1.msra.mxu0 0.0
  %1756 = vmatprep.subr.mxu0 0.0
  %1757 = vmatpush1.msra.mxu0 0.0
  %1758 = vmatprep.subr.mxu0 0.0
  %1759 = vmatpush1.msra.mxu0 0.0
  %1760 = vmatprep.subr.mxu0 0.0
  %1761 = vmatpush1.msra.mxu0 0.0
  %1762 = vmatprep.subr.mxu0 0.0
  %1763 = vmatpush1.msra.mxu0 0.0
  %1764 = vmatprep.subr.mxu0 0.0
  %1765 = vmatpush1.msra.mxu0 0.0
  %1766 = vmatprep.subr.mxu0 0.0
  %1767 = vmatpush1.msra.mxu0 0.0
  %1768 = vmatprep.subr.mxu0 0.0
  %1769 = vmatpush1.msra.mxu0 0.0
  %1770 = vmatprep.subr.mxu0 0.0
  %1771 = vmatpush1.msra.mxu0 0.0
  %1772 = vmatprep.subr.mxu0 0.0
  %1773 = vmatpush1.msra.mxu0 0.0
  %1774 = vmatprep.subr.mxu0 0.0
  %1775 = vmatpush1.msra.mxu0 0.0
  %1776 = vmatprep.subr.mxu0 0.0
  %1777 = vmatpush1.msra.mxu0 0.0
  %1778 = vmatprep.subr.mxu0 0.0
  %1779 = vmatpush1.msra.mxu0 0.0
  %1780 = vmatprep.subr.mxu0 0.0
  %1781 = vmatpush1.msra.mxu0 0.0
  %1782 = vmatprep.subr.mxu0 0.0
  %1783 = vmatpush1.msra.mxu0 0.0
  %1784 = vmatprep.subr.mxu0 0.0
  %1785 = vmatpush1.msra.mxu0 0.0
  %1786 = vmatprep.subr.mxu0 0.0
  %1787 = vmatpush1.msra.mxu0 0.0
  %1788 = vmatprep.subr.mxu0 0.0
  %1789 = vmatpush1.msra.mxu0 0.0
  %1790 = vmatprep.subr.mxu0 0.0
  %1791 = vmatpush1.msra.mxu0 0.0
  %1792 = vmatprep.mubr.f32.mxu0 0.0
  %1793 = vmatmul.mubr.f32.gmra.mrb[0].mxu0 %v1723
  %v1794 = vpop.f32.mrb[0].mxu0
  %v1795 = vadd.f32 %v1721, %v1794
  %v1796 = vpop.f32.mrb[0].mxu0
  %1797 = vmatprep.mubr.f32.mxu0 0.0
  %1798 = vmatmul.mubr.f32.gmra.mrb[0].mxu0 %v1726
  %v1799 = vpop.f32.mrb[0].mxu0
  %v1800 = vadd.f32 %v1721, %v1799
  %v1801 = vpop.f32.mrb[0].mxu0
  %1802 = vdwg.mxu0
  %vm1803 = vcmp.gt.f32.partialorder %v1795, 0.0
  %vm1804 = vcmp.gt.f32.partialorder %v1800, 0.0
  %v1805 = vmul.f32 %v1795, 0.2
  %v1806 = vmul.f32 %v1800, 0.2
  %v1807 = vsel %vm1803, %v1795, %v1805
  %v1808 = vsel %vm1804, %v1800, %v1806
  %v1809 = vadd.f32 %v1807, %v176
  %v1810 = vadd.f32 %v1808, %v177
  %1811 = vmax.xlane.f32.xlu0 %v1809
  %v1812 = vpop.xlane.xlu0 %1811
  %1813 = vmax.xlane.f32.xlu0 %v1810
  %v1814 = vpop.xlane.xlu0 %1813
  %v1815 = vsub.f32 %v1809, %v1812
  %v1816 = vsub.f32 %v1810, %v1814
  %v1817 = vmul.f32 %v1815, 1.442695
  %v1818 = vpow.pop %v1817
  %v1819 = vmul.f32 %v1816, 1.442695
  %v1820 = vpow.pop %v1819
  %1821 = vmatprep.subr.mxu0 0.0
  %1822 = vmatpush1.msra.mxu0 %v62
  %1823 = vmatprep.subr.mxu0 0.0
  %1824 = vmatpush1.msra.mxu0 %v63
  %1825 = vmatprep.subr.mxu0 0.0
  %1826 = vmatpush1.msra.mxu0 %v64
  %1827 = vmatprep.subr.mxu0 0.0
  %1828 = vmatpush1.msra.mxu0 %v65
  %1829 = vmatprep.subr.mxu0 0.0
  %1830 = vmatpush1.msra.mxu0 %v66
  %1831 = vmatprep.subr.mxu0 0.0
  %1832 = vmatpush1.msra.mxu0 %v67
  %1833 = vmatprep.subr.mxu0 0.0
  %1834 = vmatpush1.msra.mxu0 %v68
  %1835 = vmatprep.subr.mxu0 0.0
  %1836 = vmatpush1.msra.mxu0 %v69
  %1837 = vmatprep.subr.mxu0 0.0
  %1838 = vmatpush1.msra.mxu0 %v70
  %1839 = vmatprep.subr.mxu0 0.0
  %1840 = vmatpush1.msra.mxu0 %v71
  %1841 = vmatprep.subr.mxu0 0.0
  %1842 = vmatpush1.msra.mxu0 %v72
  %1843 = vmatprep.subr.mxu0 0.0
  %1844 = vmatpush1.msra.mxu0 %v73
  %1845 = vmatprep.subr.mxu0 0.0
  %1846 = vmatpush1.msra.mxu0 %v74
  %1847 = vmatprep.subr.mxu0 0.0
  %1848 = vmatpush1.msra.mxu0 %v75
  %1849 = vmatprep.subr.mxu0 0.0
  %1850 = vmatpush1.msra.mxu0 %v76
  %1851 = vmatprep.subr.mxu0 0.0
  %1852 = vmatpush1.msra.mxu0 %v77
  %1853 = vmatprep.subr.mxu0 0.0
  %1854 = vmatpush1.msra.mxu0 0.0
  %1855 = vmatprep.subr.mxu0 0.0
  %1856 = vmatpush1.msra.mxu0 0.0
  %1857 = vmatprep.subr.mxu0 0.0
  %1858 = vmatpush1.msra.mxu0 0.0
  %1859 = vmatprep.subr.mxu0 0.0
  %1860 = vmatpush1.msra.mxu0 0.0
  %1861 = vmatprep.subr.mxu0 0.0
  %1862 = vmatpush1.msra.mxu0 0.0
  %1863 = vmatprep.subr.mxu0 0.0
  %1864 = vmatpush1.msra.mxu0 0.0
  %1865 = vmatprep.subr.mxu0 0.0
  %1866 = vmatpush1.msra.mxu0 0.0
  %1867 = vmatprep.subr.mxu0 0.0
  %1868 = vmatpush1.msra.mxu0 0.0
  %1869 = vmatprep.subr.mxu0 0.0
  %1870 = vmatpush1.msra.mxu0 0.0
  %1871 = vmatprep.subr.mxu0 0.0
  %1872 = vmatpush1.msra.mxu0 0.0
  %1873 = vmatprep.subr.mxu0 0.0
  %1874 = vmatpush1.msra.mxu0 0.0
  %1875 = vmatprep.subr.mxu0 0.0
  %1876 = vmatpush1.msra.mxu0 0.0
  %1877 = vmatprep.subr.mxu0 0.0
  %1878 = vmatpush1.msra.mxu0 0.0
  %1879 = vmatprep.subr.mxu0 0.0
  %1880 = vmatpush1.msra.mxu0 0.0
  %1881 = vmatprep.subr.mxu0 0.0
  %1882 = vmatpush1.msra.mxu0 0.0
  %1883 = vmatprep.subr.mxu0 0.0
  %1884 = vmatpush1.msra.mxu0 0.0
  %1885 = vmatprep.mubr.f32.mxu0 0.0
  %1886 = vmatmul.mubr.f32.gmra.mrb[0].mxu0 %v1818
  %v1887 = vpop.f32.mrb[0].mxu0
  %v1888 = vadd.f32 0.0, %v1887
  %v1889 = vpop.f32.mrb[0].mxu0
  %1890 = vmatprep.mubr.f32.mxu0 0.0
  %1891 = vmatmul.mubr.f32.gmra.mrb[0].mxu0 %v1820
  %v1892 = vpop.f32.mrb[0].mxu0
  %v1893 = vadd.f32 0.0, %v1892
  %v1894 = vpop.f32.mrb[0].mxu0
  %1895 = vdwg.mxu0
  %v1896 = vrcp.pop %v1888
  %v1897 = vrcp.pop %v1893
  %v1899 = vsel %vm185, %v1896, 0
  %v1902 = vsel %vm185, %v1897, 0
  %1904 = vmatprep.subr.mxu0 0.0
  %1905 = vmatpush1.msra.mxu0 %v59
  %1906 = vmatprep.subr.mxu0 0.0
  %1907 = vmatpush1.msra.mxu0 0.0
  %1908 = vmatprep.subr.mxu0 0.0
  %1909 = vmatpush1.msra.mxu0 0.0
  %1910 = vmatprep.subr.mxu0 0.0
  %1911 = vmatpush1.msra.mxu0 0.0
  %1912 = vmatprep.subr.mxu0 0.0
  %1913 = vmatpush1.msra.mxu0 0.0
  %1914 = vmatprep.subr.mxu0 0.0
  %1915 = vmatpush1.msra.mxu0 0.0
  %1916 = vmatprep.subr.mxu0 0.0
  %1917 = vmatpush1.msra.mxu0 0.0
  %1918 = vmatprep.subr.mxu0 0.0
  %1919 = vmatpush1.msra.mxu0 0.0
  %1920 = vmatprep.subr.mxu0 0.0
  %1921 = vmatpush1.msra.mxu0 0.0
  %1922 = vmatprep.subr.mxu0 0.0
  %1923 = vmatpush1.msra.mxu0 0.0
  %1924 = vmatprep.subr.mxu0 0.0
  %1925 = vmatpush1.msra.mxu0 0.0
  %1926 = vmatprep.subr.mxu0 0.0
  %1927 = vmatpush1.msra.mxu0 0.0
  %1928 = vmatprep.subr.mxu0 0.0
  %1929 = vmatpush1.msra.mxu0 0.0
  %1930 = vmatprep.subr.mxu0 0.0
  %1931 = vmatpush1.msra.mxu0 0.0
  %1932 = vmatprep.subr.mxu0 0.0
  %1933 = vmatpush1.msra.mxu0 0.0
  %1934 = vmatprep.subr.mxu0 0.0
  %1935 = vmatpush1.msra.mxu0 0.0
  %1936 = vmatprep.subr.mxu0 0.0
  %1937 = vmatpush1.msra.mxu0 0.0
  %1938 = vmatprep.subr.mxu0 0.0
  %1939 = vmatpush1.msra.mxu0 0.0
  %1940 = vmatprep.subr.mxu0 0.0
  %1941 = vmatpush1.msra.mxu0 0.0
  %1942 = vmatprep.subr.mxu0 0.0
  %1943 = vmatpush1.msra.mxu0 0.0
  %1944 = vmatprep.subr.mxu0 0.0
  %1945 = vmatpush1.msra.mxu0 0.0
  %1946 = vmatprep.subr.mxu0 0.0
  %1947 = vmatpush1.msra.mxu0 0.0
  %1948 = vmatprep.subr.mxu0 0.0
  %1949 = vmatpush1.msra.mxu0 0.0
  %1950 = vmatprep.subr.mxu0 0.0
  %1951 = vmatpush1.msra.mxu0 0.0
  %1952 = vmatprep.subr.mxu0 0.0
  %1953 = vmatpush1.msra.mxu0 0.0
  %1954 = vmatprep.subr.mxu0 0.0
  %1955 = vmatpush1.msra.mxu0 0.0
  %1956 = vmatprep.subr.mxu0 0.0
  %1957 = vmatpush1.msra.mxu0 0.0
  %1958 = vmatprep.subr.mxu0 0.0
  %1959 = vmatpush1.msra.mxu0 0.0
  %1960 = vmatprep.subr.mxu0 0.0
  %1961 = vmatpush1.msra.mxu0 0.0
  %1962 = vmatprep.subr.mxu0 0.0
  %1963 = vmatpush1.msra.mxu0 0.0
  %1964 = vmatprep.subr.mxu0 0.0
  %1965 = vmatpush1.msra.mxu0 0.0
  %1966 = vmatprep.subr.mxu0 0.0
  %1967 = vmatpush1.msra.mxu0 0.0
  %1968 = vmatprep.mubr.f32.mxu0 0.0
  %1969 = vmatmul.mubr.f32.gmra.mrb[0].mxu0 %v1899
  %v1970 = vpop.f32.mrb[0].mxu0
  %v1971 = vadd.f32 0.0, %v1970
  %v1972 = vpop.f32.mrb[0].mxu0
  %1973 = vmatprep.mubr.f32.mxu0 0.0
  %1974 = vmatmul.mubr.f32.gmra.mrb[0].mxu0 %v1902
  %v1975 = vpop.f32.mrb[0].mxu0
  %v1976 = vadd.f32 0.0, %v1975
  %v1977 = vpop.f32.mrb[0].mxu0
  %1978 = vdwg.mxu0
  %v1979 = vmul.f32 %v1818, %v1971
  %v1980 = vmul.f32 %v1820, %v1976
  %v1981 = vpack.c.bf16 %v1535, %v1532
  %v1983 = vcombine.high %v1981, %v1981
  %v1985 = vunpack.c.l.s4 1966171168
  %v1986 = vunpack.c.0.s8 %v1985
  %v1987 = vlaneseq
  %v1988 = vshrl.u32 %v1987, 7
  %v1989 = vsub.s32 %v1986, %v1988
  %v1990 = vrot.slane %v1981, %v1989
  %v1992 = vunpack.c.l.s4 1966171168
  %v1993 = vunpack.c.0.s8 %v1992
  %v1994 = vlaneseq
  %v1995 = vshrl.u32 %v1994, 7
  %v1996 = vsub.s32 %v1993, %v1995
  %v1997 = vrot.slane %v1983, %v1996
  %v1998 = vcombine.high %v1990, %v1990
  %v1999 = vcombine.high %v1997, %v1997
  %v2001 = vunpack.c.l.s4 1966171168
  %v2002 = vunpack.c.0.s8 %v2001
  %v2003 = vlaneseq
  %v2004 = vshrl.u32 %v2003, 7
  %v2005 = vsub.s32 %v2002, %v2004
  %v2006 = vrot.slane %v1990, %v2005
  %v2008 = vunpack.c.l.s4 1966171168
  %v2009 = vunpack.c.0.s8 %v2008
  %v2010 = vlaneseq
  %v2011 = vshrl.u32 %v2010, 7
  %v2012 = vsub.s32 %v2009, %v2011
  %v2013 = vrot.slane %v1997, %v2012
  %v2015 = vunpack.c.l.s4 1966171168
  %v2016 = vunpack.c.0.s8 %v2015
  %v2017 = vlaneseq
  %v2018 = vshrl.u32 %v2017, 7
  %v2019 = vsub.s32 %v2016, %v2018
  %v2020 = vrot.slane %v1998, %v2019
  %v2022 = vunpack.c.l.s4 1966171168
  %v2023 = vunpack.c.0.s8 %v2022
  %v2024 = vlaneseq
  %v2025 = vshrl.u32 %v2024, 7
  %v2026 = vsub.s32 %v2023, %v2025
  %v2027 = vrot.slane %v1999, %v2026
  %v2028 = vcombine.high %v2006, %v2006
  %v2029 = vcombine.high %v2013, %v2013
  %v2030 = vcombine.high %v2020, %v2020
  %v2031 = vcombine.high %v2027, %v2027
  %v2032 = vunpack.i.l.s16 %v2006
  %v2033 = vunpack.i.h.s16 %v2006
  %v2034 = vunpack.i.l.s16 %v2020
  %v2035 = vunpack.i.h.s16 %v2020
  %v2036 = vunpack.i.l.s16 %v2028
  %v2037 = vunpack.i.h.s16 %v2028
  %v2038 = vunpack.i.l.s16 %v2030
  %v2039 = vunpack.i.h.s16 %v2030
  %v2040 = vunpack.i.l.s16 %v2013
  %v2041 = vunpack.i.h.s16 %v2013
  %v2042 = vunpack.i.l.s16 %v2027
  %v2043 = vunpack.i.h.s16 %v2027
  %v2044 = vunpack.i.l.s16 %v2029
  %v2045 = vunpack.i.h.s16 %v2029
  %v2046 = vunpack.i.l.s16 %v2031
  %v2047 = vunpack.i.h.s16 %v2031
  %v2048 = vpack.i.b16 %v2032, %v2032
  %v2049 = vpack.i.b16 %v2033, %v2033
  %v2050 = vpack.i.b16 %v2034, %v2034
  %v2051 = vpack.i.b16 %v2035, %v2035
  %v2052 = vpack.i.b16 %v2036, %v2036
  %v2053 = vpack.i.b16 %v2037, %v2037
  %v2054 = vpack.i.b16 %v2038, %v2038
  %v2055 = vpack.i.b16 %v2039, %v2039
  %v2056 = vpack.i.b16 %v2040, %v2040
  %v2057 = vpack.i.b16 %v2041, %v2041
  %v2058 = vpack.i.b16 %v2042, %v2042
  %v2059 = vpack.i.b16 %v2043, %v2043
  %v2060 = vpack.i.b16 %v2044, %v2044
  %v2061 = vpack.i.b16 %v2045, %v2045
  %v2062 = vpack.i.b16 %v2046, %v2046
  %v2063 = vpack.i.b16 %v2047, %v2047
  %v2064 = vlaneseq
  %v2065 = vshrl.u32 %v2064, 7
  %v2066 = vsub.s32 0, %v2065
  %v2067 = vrot.slane %v2048, %v2066
  %v2068 = vlaneseq
  %v2069 = vshrl.u32 %v2068, 7
  %v2070 = vsub.s32 0, %v2069
  %v2071 = vrot.slane %v2049, %v2070
  %v2072 = vlaneseq
  %v2073 = vshrl.u32 %v2072, 7
  %v2074 = vsub.s32 0, %v2073
  %v2075 = vrot.slane %v2050, %v2074
  %v2076 = vlaneseq
  %v2077 = vshrl.u32 %v2076, 7
  %v2078 = vsub.s32 0, %v2077
  %v2079 = vrot.slane %v2051, %v2078
  %v2080 = vlaneseq
  %v2081 = vshrl.u32 %v2080, 7
  %v2082 = vsub.s32 0, %v2081
  %v2083 = vrot.slane %v2052, %v2082
  %v2084 = vlaneseq
  %v2085 = vshrl.u32 %v2084, 7
  %v2086 = vsub.s32 0, %v2085
  %v2087 = vrot.slane %v2053, %v2086
  %v2088 = vlaneseq
  %v2089 = vshrl.u32 %v2088, 7
  %v2090 = vsub.s32 0, %v2089
  %v2091 = vrot.slane %v2054, %v2090
  %v2092 = vlaneseq
  %v2093 = vshrl.u32 %v2092, 7
  %v2094 = vsub.s32 0, %v2093
  %v2095 = vrot.slane %v2055, %v2094
  %v2096 = vlaneseq
  %v2097 = vshrl.u32 %v2096, 7
  %v2098 = vsub.s32 0, %v2097
  %v2099 = vrot.slane %v2056, %v2098
  %v2100 = vlaneseq
  %v2101 = vshrl.u32 %v2100, 7
  %v2102 = vsub.s32 0, %v2101
  %v2103 = vrot.slane %v2057, %v2102
  %v2104 = vlaneseq
  %v2105 = vshrl.u32 %v2104, 7
  %v2106 = vsub.s32 0, %v2105
  %v2107 = vrot.slane %v2058, %v2106
  %v2108 = vlaneseq
  %v2109 = vshrl.u32 %v2108, 7
  %v2110 = vsub.s32 0, %v2109
  %v2111 = vrot.slane %v2059, %v2110
  %v2112 = vlaneseq
  %v2113 = vshrl.u32 %v2112, 7
  %v2114 = vsub.s32 0, %v2113
  %v2115 = vrot.slane %v2060, %v2114
  %v2116 = vlaneseq
  %v2117 = vshrl.u32 %v2116, 7
  %v2118 = vsub.s32 0, %v2117
  %v2119 = vrot.slane %v2061, %v2118
  %v2120 = vlaneseq
  %v2121 = vshrl.u32 %v2120, 7
  %v2122 = vsub.s32 0, %v2121
  %v2123 = vrot.slane %v2062, %v2122
  %v2124 = vlaneseq
  %v2125 = vshrl.u32 %v2124, 7
  %v2126 = vsub.s32 0, %v2125
  %v2127 = vrot.slane %v2063, %v2126
  %v2129 = vpack.i.b16 %v2067, %v2067
  %v2131 = vlaneseq
  %v2132 = vshrl.u32 %v2131, 7
  %v2133 = vsub.s32 0, %v2132
  %v2134 = vrot.slane %v2129, %v2133
  %v2136 = vpack.i.b16 %v2071, %v2071
  %v2138 = vlaneseq
  %v2139 = vshrl.u32 %v2138, 7
  %v2140 = vsub.s32 0, %v2139
  %v2141 = vrot.slane %v2136, %v2140
  %v2143 = vpack.i.b16 %v2075, %v2075
  %v2145 = vlaneseq
  %v2146 = vshrl.u32 %v2145, 7
  %v2147 = vsub.s32 0, %v2146
  %v2148 = vrot.slane %v2143, %v2147
  %v2150 = vpack.i.b16 %v2079, %v2079
  %v2152 = vlaneseq
  %v2153 = vshrl.u32 %v2152, 7
  %v2154 = vsub.s32 0, %v2153
  %v2155 = vrot.slane %v2150, %v2154
  %v2157 = vpack.i.b16 %v2083, %v2083
  %v2159 = vlaneseq
  %v2160 = vshrl.u32 %v2159, 7
  %v2161 = vsub.s32 0, %v2160
  %v2162 = vrot.slane %v2157, %v2161
  %v2164 = vpack.i.b16 %v2087, %v2087
  %v2166 = vlaneseq
  %v2167 = vshrl.u32 %v2166, 7
  %v2168 = vsub.s32 0, %v2167
  %v2169 = vrot.slane %v2164, %v2168
  %v2171 = vpack.i.b16 %v2091, %v2091
  %v2173 = vlaneseq
  %v2174 = vshrl.u32 %v2173, 7
  %v2175 = vsub.s32 0, %v2174
  %v2176 = vrot.slane %v2171, %v2175
  %v2178 = vpack.i.b16 %v2095, %v2095
  %v2180 = vlaneseq
  %v2181 = vshrl.u32 %v2180, 7
  %v2182 = vsub.s32 0, %v2181
  %v2183 = vrot.slane %v2178, %v2182
  %v2185 = vpack.i.b16 %v2099, %v2099
  %v2187 = vlaneseq
  %v2188 = vshrl.u32 %v2187, 7
  %v2189 = vsub.s32 0, %v2188
  %v2190 = vrot.slane %v2185, %v2189
  %v2192 = vpack.i.b16 %v2103, %v2103
  %v2194 = vlaneseq
  %v2195 = vshrl.u32 %v2194, 7
  %v2196 = vsub.s32 0, %v2195
  %v2197 = vrot.slane %v2192, %v2196
  %v2199 = vpack.i.b16 %v2107, %v2107
  %v2201 = vlaneseq
  %v2202 = vshrl.u32 %v2201, 7
  %v2203 = vsub.s32 0, %v2202
  %v2204 = vrot.slane %v2199, %v2203
  %v2206 = vpack.i.b16 %v2111, %v2111
  %v2208 = vlaneseq
  %v2209 = vshrl.u32 %v2208, 7
  %v2210 = vsub.s32 0, %v2209
  %v2211 = vrot.slane %v2206, %v2210
  %v2213 = vpack.i.b16 %v2115, %v2115
  %v2215 = vlaneseq
  %v2216 = vshrl.u32 %v2215, 7
  %v2217 = vsub.s32 0, %v2216
  %v2218 = vrot.slane %v2213, %v2217
  %v2220 = vpack.i.b16 %v2119, %v2119
  %v2222 = vlaneseq
  %v2223 = vshrl.u32 %v2222, 7
  %v2224 = vsub.s32 0, %v2223
  %v2225 = vrot.slane %v2220, %v2224
  %v2227 = vpack.i.b16 %v2123, %v2123
  %v2229 = vlaneseq
  %v2230 = vshrl.u32 %v2229, 7
  %v2231 = vsub.s32 0, %v2230
  %v2232 = vrot.slane %v2227, %v2231
  %v2234 = vpack.i.b16 %v2127, %v2127
  %v2236 = vlaneseq
  %v2237 = vshrl.u32 %v2236, 7
  %v2238 = vsub.s32 0, %v2237
  %v2239 = vrot.slane %v2234, %v2238
  %v2240 = vld [vmem:[%s15] sm:$0xf]
  %v2241 = vld [vmem:[%s15 + $0x4] sm:$0xf]
  %v2242 = vld [vmem:[%s15 + $0x8] sm:$0xf]
  %v2243 = vld [vmem:[%s15 + $0xc] sm:$0xf]
  %v2244 = vld [vmem:[%s15 + $0x10] sm:$0xf]
  %v2245 = vld [vmem:[%s15 + $0x14] sm:$0xf]
  %v2246 = vld [vmem:[%s15 + $0x18] sm:$0xf]
  %v2247 = vld [vmem:[%s15 + $0x1c] sm:$0xf]
  %v2248 = vld [vmem:[%s15 + $0x20] sm:$0xf]
  %v2249 = vld [vmem:[%s15 + $0x24] sm:$0xf]
  %v2250 = vld [vmem:[%s15 + $0x28] sm:$0xf]
  %v2251 = vld [vmem:[%s15 + $0x2c] sm:$0xf]
  %v2252 = vld [vmem:[%s15 + $0x30] sm:$0xf]
  %v2253 = vld [vmem:[%s15 + $0x34] sm:$0xf]
  %v2254 = vld [vmem:[%s15 + $0x38] sm:$0xf]
  %v2255 = vld [vmem:[%s15 + $0x3c] sm:$0xf]
  %v2256 = vmul.bf16 %v2134, %v2240
  %v2257 = vmul.bf16 %v2141, %v2241
  %v2258 = vmul.bf16 %v2148, %v2242
  %v2259 = vmul.bf16 %v2155, %v2243
  %v2260 = vmul.bf16 %v2162, %v2244
  %v2261 = vmul.bf16 %v2169, %v2245
  %v2262 = vmul.bf16 %v2176, %v2246
  %v2263 = vmul.bf16 %v2183, %v2247
  %v2264 = vmul.bf16 %v2190, %v2248
  %v2265 = vmul.bf16 %v2197, %v2249
  %v2266 = vmul.bf16 %v2204, %v2250
  %v2267 = vmul.bf16 %v2211, %v2251
  %v2268 = vmul.bf16 %v2218, %v2252
  %v2269 = vmul.bf16 %v2225, %v2253
  %v2270 = vmul.bf16 %v2232, %v2254
  %v2271 = vmul.bf16 %v2239, %v2255
  %v2272 = vpack.c.bf16 %v1980, %v1979
  %v2289 = vunpack.c.l.b16 %v2256
  %v2290 = vunpack.c.l.b16 %v2257
  %v2291 = vunpack.c.l.b16 %v2258
  %v2292 = vunpack.c.l.b16 %v2259
  %v2293 = vunpack.c.l.b16 %v2260
  %v2294 = vunpack.c.l.b16 %v2261
  %v2295 = vunpack.c.l.b16 %v2262
  %v2296 = vunpack.c.l.b16 %v2263
  %v2297 = vunpack.c.l.b16 %v2264
  %v2298 = vunpack.c.l.b16 %v2265
  %v2299 = vunpack.c.l.b16 %v2266
  %v2300 = vunpack.c.l.b16 %v2267
  %v2301 = vunpack.c.l.b16 %v2268
  %v2302 = vunpack.c.l.b16 %v2269
  %v2303 = vunpack.c.l.b16 %v2270
  %v2304 = vunpack.c.l.b16 %v2271
  %v2305 = vpack.c.b16 %v2290, %v2289
  %v2306 = vpack.c.b16 %v2292, %v2291
  %v2307 = vpack.c.b16 %v2294, %v2293
  %v2308 = vpack.c.b16 %v2296, %v2295
  %v2309 = vpack.c.b16 %v2298, %v2297
  %v2310 = vpack.c.b16 %v2300, %v2299
  %v2311 = vpack.c.b16 %v2302, %v2301
  %v2312 = vpack.c.b16 %v2304, %v2303
  %2321 = vmatprep.subr.bf16.mxu0 0
  %2322 = vmatpush1.bf16.msra.mxu0 %v2305
  %2323 = vmatprep.subr.bf16.mxu0 0
  %2324 = vmatpush1.bf16.msra.mxu0 %v2306
  %2325 = vmatprep.subr.bf16.mxu0 0
  %2326 = vmatpush1.bf16.msra.mxu0 %v2307
  %2327 = vmatprep.subr.bf16.mxu0 0
  %2328 = vmatpush1.bf16.msra.mxu0 %v2308
  %2329 = vmatprep.subr.bf16.mxu0 0
  %2330 = vmatpush1.bf16.msra.mxu0 %v2309
  %2331 = vmatprep.subr.bf16.mxu0 0
  %2332 = vmatpush1.bf16.msra.mxu0 %v2310
  %2333 = vmatprep.subr.bf16.mxu0 0
  %2334 = vmatpush1.bf16.msra.mxu0 %v2311
  %2335 = vmatprep.subr.bf16.mxu0 0
  %2336 = vmatpush1.bf16.msra.mxu0 %v2312
  %2337 = vmatprep.subr.bf16.mxu0 0
  %2338 = vmatpush1.bf16.msra.mxu0 0
  %2339 = vmatprep.subr.bf16.mxu0 0
  %2340 = vmatpush1.bf16.msra.mxu0 0
  %2341 = vmatprep.subr.bf16.mxu0 0
  %2342 = vmatpush1.bf16.msra.mxu0 0
  %2343 = vmatprep.subr.bf16.mxu0 0
  %2344 = vmatpush1.bf16.msra.mxu0 0
  %2345 = vmatprep.subr.bf16.mxu0 0
  %2346 = vmatpush1.bf16.msra.mxu0 0
  %2347 = vmatprep.subr.bf16.mxu0 0
  %2348 = vmatpush1.bf16.msra.mxu0 0
  %2349 = vmatprep.subr.bf16.mxu0 0
  %2350 = vmatpush1.bf16.msra.mxu0 0
  %2351 = vmatprep.subr.bf16.mxu0 0
  %2352 = vmatpush1.bf16.msra.mxu0 0
  %2353 = vmatprep.mubr.bf16.mxu0 0
  %2354 = vmatmul.mubr.bf16.gmra.mrb[0].mxu0 %v2272
  %v2355 = vpop.f32.mrb[0].mxu0
  %v2356 = vadd.f32 0.0, %v2355
  %v2357 = vpop.f32.mrb[0].mxu0
  %v2358 = vpop.f32.mrb[0].mxu0
  %v2359 = vadd.f32 0.0, %v2358
  %v2360 = vpop.f32.mrb[0].mxu0
  %2361 = vdwg.mxu0
  %v2362 = vld [vmem:[%s16] sm:$0xff]
  %v2363 = vld [vmem:[%s16 + $0x8] sm:$0xff]
  %v2364 = vld [vmem:[%s16 + $0x10] sm:$0xff]
  %v2365 = vld [vmem:[%s16 + $0x18] sm:$0xff]
  %v2366 = vld [vmem:[%s14] sm:$0x1]
  %v2368 = vlaneseq
  %v2369 = vshrl.u32 %v2368, 7
  %v2370 = vsub.s32 0, %v2369
  %v2371 = vrot.slane %v2366, %v2370
  %v2374 = vsel %vm1493, %v2356, 0
  %v2377 = vsel %vm1493, %v2359, 0
  %2379 = vmatprep.subr.mxu0 0.0
  %2380 = vmatpush1.msra.mxu0 %v2362
  %2381 = vmatprep.subr.mxu0 0.0
  %2382 = vmatpush1.msra.mxu0 %v2363
  %2383 = vmatprep.subr.mxu0 0.0
  %2384 = vmatpush1.msra.mxu0 %v2364
  %2385 = vmatprep.subr.mxu0 0.0
  %2386 = vmatpush1.msra.mxu0 %v2365
  %2387 = vmatprep.subr.mxu0 0.0
  %2388 = vmatpush1.msra.mxu0 0.0
  %2389 = vmatprep.subr.mxu0 0.0
  %2390 = vmatpush1.msra.mxu0 0.0
  %2391 = vmatprep.subr.mxu0 0.0
  %2392 = vmatpush1.msra.mxu0 0.0
  %2393 = vmatprep.subr.mxu0 0.0
  %2394 = vmatpush1.msra.mxu0 0.0
  %2395 = vmatprep.subr.mxu0 0.0
  %2396 = vmatpush1.msra.mxu0 0.0
  %2397 = vmatprep.subr.mxu0 0.0
  %2398 = vmatpush1.msra.mxu0 0.0
  %2399 = vmatprep.subr.mxu0 0.0
  %2400 = vmatpush1.msra.mxu0 0.0
  %2401 = vmatprep.subr.mxu0 0.0
  %2402 = vmatpush1.msra.mxu0 0.0
  %2403 = vmatprep.subr.mxu0 0.0
  %2404 = vmatpush1.msra.mxu0 0.0
  %2405 = vmatprep.subr.mxu0 0.0
  %2406 = vmatpush1.msra.mxu0 0.0
  %2407 = vmatprep.subr.mxu0 0.0
  %2408 = vmatpush1.msra.mxu0 0.0
  %2409 = vmatprep.subr.mxu0 0.0
  %2410 = vmatpush1.msra.mxu0 0.0
  %2411 = vmatprep.subr.mxu0 0.0
  %2412 = vmatpush1.msra.mxu0 0.0
  %2413 = vmatprep.subr.mxu0 0.0
  %2414 = vmatpush1.msra.mxu0 0.0
  %2415 = vmatprep.subr.mxu0 0.0
  %2416 = vmatpush1.msra.mxu0 0.0
  %2417 = vmatprep.subr.mxu0 0.0
  %2418 = vmatpush1.msra.mxu0 0.0
  %2419 = vmatprep.subr.mxu0 0.0
  %2420 = vmatpush1.msra.mxu0 0.0
  %2421 = vmatprep.subr.mxu0 0.0
  %2422 = vmatpush1.msra.mxu0 0.0
  %2423 = vmatprep.subr.mxu0 0.0
  %2424 = vmatpush1.msra.mxu0 0.0
  %2425 = vmatprep.subr.mxu0 0.0
  %2426 = vmatpush1.msra.mxu0 0.0
  %2427 = vmatprep.subr.mxu0 0.0
  %2428 = vmatpush1.msra.mxu0 0.0
  %2429 = vmatprep.subr.mxu0 0.0
  %2430 = vmatpush1.msra.mxu0 0.0
  %2431 = vmatprep.subr.mxu0 0.0
  %2432 = vmatpush1.msra.mxu0 0.0
  %2433 = vmatprep.subr.mxu0 0.0
  %2434 = vmatpush1.msra.mxu0 0.0
  %2435 = vmatprep.subr.mxu0 0.0
  %2436 = vmatpush1.msra.mxu0 0.0
  %2437 = vmatprep.subr.mxu0 0.0
  %2438 = vmatpush1.msra.mxu0 0.0
  %2439 = vmatprep.subr.mxu0 0.0
  %2440 = vmatpush1.msra.mxu0 0.0
  %2441 = vmatprep.subr.mxu0 0.0
  %2442 = vmatpush1.msra.mxu0 0.0
  %2443 = vmatprep.mubr.f32.mxu0 0.0
  %2444 = vmatmul.mubr.f32.gmra.mrb[0].mxu0 %v2374
  %v2445 = vpop.f32.mrb[0].mxu0
  %v2446 = vadd.f32 %v2371, %v2445
  %v2447 = vpop.f32.mrb[0].mxu0
  %2448 = vmatprep.mubr.f32.mxu0 0.0
  %2449 = vmatmul.mubr.f32.gmra.mrb[0].mxu0 %v2377
  %v2450 = vpop.f32.mrb[0].mxu0
  %v2451 = vadd.f32 %v2371, %v2450
  %v2452 = vpop.f32.mrb[0].mxu0
  %2453 = vdwg.mxu0
  %vm2454 = vcmask 31744
  %2455 = vst.msk [vmem:[%s17] sm:$0xff] %vm2454, %v2446
  %2456 = vst.msk [vmem:[%s17 + $0x8] sm:$0xff] %vm2454, %v2451
  // Predicated region
  $region70: #{gat_forward.1} parent=0 // pred_check
    _
  $region71: #{gat_forward.1} parent=0 // pred_check_branch
    %2458 = sbr.rel (0) target = $region73
  $region72: #{gat_forward.1} parent=0 // pred_region
    _
  $region73: #{gat_forward.1} parent=0 // pred_fallthru
    _
  // Predicated region
  $region74: #{gat_forward.1} parent=0 // pred_check
    _
  $region75: #{gat_forward.1} parent=0 // pred_check_branch
    %2460 = sbr.rel (0) target = $region77
  $region76: #{gat_forward.1} parent=0 // pred_region
    _
  $region77: #{gat_forward.1} parent=0 // pred_fallthru
    _

</llo_original>
